<compile_context>
chip_gen: v5e
topology: v5e:2x2
jax: 0.10.0
libtpu: 0.0.40
codegen_flags: <defaults>
</compile_context>

<pallas_src>
import math

import jax
import jax.numpy as jnp
from jax.experimental import pallas as pl
from jax.experimental.pallas import tpu as pltpu


def make_uni_encoder_block_kernel(num_heads, head_dim, prenorm, *, eps=1e-5):
    """Fused kernel: LN -> MHA (QKV, softmax, out-proj) -> LN -> FFN -> LN, one (batch, q-tile) per step."""
    scale = 1.0 / math.sqrt(head_dim)
    d_model = num_heads * head_dim
    bf16 = jnp.bfloat16

    def kernel(x_ref, mask_ref,
               g1_ref, be1_ref, g2_ref, be2_ref,
               wq_ref, bq_ref, wkv_ref, bkv_ref,
               wo_ref, bo_ref,
               w1_ref, c1_ref, w2_ref, c2_ref,
               out_ref, attn_ref,
               k_sc, v_sc):
        qi = pl.program_id(1)
        tq = out_ref.shape[1]

        g1, be1 = g1_ref[0], be1_ref[0]
        g2, be2 = g2_ref[0], be2_ref[0]

        def layer_norm(v, g, b):
            mu = jnp.mean(v, axis=-1, keepdims=True)
            var = jnp.mean(jnp.square(v - mu), axis=-1, keepdims=True)
            return (v - mu) * jax.lax.rsqrt(var + eps) * g + b

        # ---- K/V for the whole sequence: computed once per batch row, cached in bf16 VMEM ----
        @pl.when(qi == 0)
        def _():
            x_full = x_ref[0]                                             # (S, D) f32
            enc_kv = layer_norm(x_full, g1, be1) if prenorm else x_full
            kv = jnp.dot(enc_kv.astype(bf16), wkv_ref[...],
                         preferred_element_type=jnp.float32) + bkv_ref[0]  # (S, 2D), one matmul
            s_len = kv.shape[0]
            k = kv[:, :d_model]
            v = kv[:, d_model:]
            k_sc[...] = jnp.transpose(
                k.reshape(s_len, num_heads, head_dim), (1, 0, 2)).astype(bf16)   # (H, S, hd)
            v_sc[...] = jnp.transpose(
                v.reshape(s_len, num_heads, head_dim), (1, 0, 2)).astype(bf16)   # (H, S, hd)

        # ---- attention sub-block: query tile sliced from the resident full-sequence block -------
        row0 = pl.multiple_of(qi * tq, tq)
        x_q = x_ref[0, pl.ds(row0, tq), :]                                # (tq, D) f32
        enc_q = layer_norm(x_q, g1, be1) if prenorm else x_q
        residual = enc_q                                                  # f32

        q = jnp.dot(enc_q.astype(bf16), wq_ref[...],
                    preferred_element_type=jnp.float32) + bq_ref[0]       # (tq, D) f32
        q = q * scale   # fold 1/sqrt(hd) into the small tensor, not the (H,tq,S) scores
        q_h = jnp.transpose(q.reshape(tq, num_heads, head_dim), (1, 0, 2)).astype(bf16)  # (H,tq,hd)

        # batched scores for all heads in one pass: (H, tq, S)
        s = jnp.einsum('hqd,hkd->hqk', q_h, k_sc[...],
                       preferred_element_type=jnp.float32)
        mask = mask_ref[0]                                                # (tq, S), > 0 => masked
        s = jnp.where(mask[None, :, :] > 0, -1e4, s)                      # masked_fill_(mask, -1e4)

        m = jnp.max(s, axis=-1, keepdims=True)
        e = jnp.exp(s - m)
        a = e * pl.reciprocal(jnp.sum(e, axis=-1, keepdims=True), approx=True)   # softmax over keys
        attn_ref[0] = a.astype(attn_ref.dtype)                            # (H, tq, S)

        ctx = jnp.einsum('hqk,hkd->hqd', a.astype(bf16), v_sc[...],
                         preferred_element_type=jnp.float32)              # (H, tq, hd)
        ctx = jnp.transpose(ctx, (1, 0, 2)).reshape(tq, d_model)          # concat heads
        context = jnp.dot(ctx.astype(bf16), wo_ref[...],
                          preferred_element_type=jnp.float32) + bo_ref[0]  # ONE (tq,D)@(D,D)

        out1 = residual + context if prenorm else layer_norm(residual + context, g1, be1)

        # ---- position-wise FFN sub-block (Conv1d k=1 == per-position matmul) ---------------------
        pre_ffn = layer_norm(out1, g2, be2) if prenorm else out1
        residual2 = pre_ffn
        h1 = jnp.maximum(jnp.dot(pre_ffn.astype(bf16), w1_ref[...],
                                 preferred_element_type=jnp.float32) + c1_ref[0], 0.0)
        ffn = jnp.dot(h1.astype(bf16), w2_ref[...],
                      preferred_element_type=jnp.float32) + c2_ref[0]

        final = residual2 + ffn if prenorm else layer_norm(residual2 + ffn, g2, be2)
        out_ref[0] = final.astype(out_ref.dtype)

    return kernel


def uni_encoder_block(x, attn_mask, params, *, num_heads, prenorm, attn_dtype=jnp.float32):
    """x: (B,S,D) f32; attn_mask: (B,S,S) (>0 = masked). Returns (out (B,S,D), attn (B,H,S,S))."""
    B, S, D = x.shape
    dff = params["w1"].shape[1]
    assert D % num_heads == 0
    hd = D // num_heads

    # query-tile size: 128 rows per step when S is 128-aligned, otherwise the whole sequence
    tq = 128 if S % 128 == 0 else S
    nq = S // tq

    kernel = make_uni_encoder_block_kernel(num_heads, hd, prenorm)

    bf16 = jnp.bfloat16
    # bf16 weights: halves weight DMA + VMEM residency; matmuls still accumulate in f32.
    wq = params["wq"].astype(bf16)
    wkv = jnp.concatenate([params["wk"], params["wv"]], axis=1).astype(bf16)   # (D, 2D) fused K|V
    bkv = jnp.concatenate([params["bk"], params["bv"]], axis=1)                # (1, 2D) f32
    wo = params["wo"].astype(bf16)
    w1 = params["w1"].astype(bf16)
    w2 = params["w2"].astype(bf16)
    mask_bf = attn_mask.astype(bf16)   # 0/1 mask exact in bf16; halves mask DMA

    def full(shape):
        n = len(shape)
        return pl.BlockSpec(shape, lambda b, q, _n=n: (0,) * _n)

    in_specs = [
        pl.BlockSpec((1, S, D), lambda b, q: (b, 0, 0)),      # x (full sequence, resident per b)
        pl.BlockSpec((1, tq, S), lambda b, q: (b, q, 0)),     # attn_mask rows for this q tile
        full((1, D)), full((1, D)), full((1, D)), full((1, D)),        # norm1/norm2 gamma,beta
        full((D, D)), full((1, D)),                                     # W_Q, b_Q
        full((D, 2 * D)), full((1, 2 * D)),                             # fused W_K|W_V, b_K|b_V
        full((D, D)), full((1, D)),                                     # W_out, b_out
        full((D, dff)), full((1, dff)),                                 # conv1 (kernel=1)
        full((dff, D)), full((1, D)),                                   # conv2 (kernel=1)
    ]
    out_shapes = (
        jax.ShapeDtypeStruct((B, S, D), x.dtype),
        jax.ShapeDtypeStruct((B, num_heads, S, S), attn_dtype),
    )
    out_specs = (
        pl.BlockSpec((1, tq, D), lambda b, q: (b, q, 0)),
        pl.BlockSpec((1, num_heads, tq, S), lambda b, q: (b, 0, q, 0)),
    )
    scratch_shapes = [
        pltpu.VMEM((num_heads, S, hd), bf16),   # cached K, head-major
        pltpu.VMEM((num_heads, S, hd), bf16),   # cached V, head-major
    ]

    fn = pl.pallas_call(
        kernel,
        out_shape=out_shapes,
        grid_spec=pltpu.PrefetchScalarGridSpec(
            num_scalar_prefetch=0,
            grid=(B, nq),
            in_specs=in_specs,
            out_specs=out_specs,
            scratch_shapes=scratch_shapes,
        ),
        compiler_params=pltpu.CompilerParams(
            dimension_semantics=("parallel", "arbitrary"),
            vmem_limit_bytes=32 * 1024 * 1024,
        ),
    )
    args = (
        x, mask_bf,
        params["g1"], params["b1"], params["g2"], params["b2"],
        wq, params["bq"], wkv, bkv, wo, params["bo"],
        w1, params["c1"], w2, params["c2"],
    )
    return fn(*args)


def reference(x, attn_mask, params, *, num_heads, prenorm, eps=1e-5):
    """Pure-JAX mirror of the PyTorch forward (eval mode, dropout = identity)."""
    def ln(v, g, b):
        mu = v.mean(-1, keepdims=True)
        var = jnp.square(v - mu).mean(-1, keepdims=True)
        return (v - mu) / jnp.sqrt(var + eps) * g + b

    B, S, D = x.shape
    hd = D // num_heads
    enc_in = ln(x, params["g1"], params["b1"]) if prenorm else x
    residual = enc_in
    q = (enc_in @ params["wq"] + params["bq"]).reshape(B, S, num_heads, hd).transpose(0, 2, 1, 3)
    k = (enc_in @ params["wk"] + params["bk"]).reshape(B, S, num_heads, hd).transpose(0, 2, 1, 3)
    v = (enc_in @ params["wv"] + params["bv"]).reshape(B, S, num_heads, hd).transpose(0, 2, 1, 3)
    scores = jnp.einsum("bhqd,bhkd->bhqk", q, k) / math.sqrt(hd)
    scores = jnp.where(attn_mask[:, None] > 0, -1e4, scores)
    attn = jax.nn.softmax(scores, axis=-1)
    ctx = jnp.einsum("bhqk,bhkd->bhqd", attn, v).transpose(0, 2, 1, 3).reshape(B, S, D)
    context = ctx @ params["wo"] + params["bo"]
    out1 = residual + context if prenorm else ln(residual + context, params["g1"], params["b1"])
    pre = ln(out1, params["g2"], params["b2"]) if prenorm else out1
    h1 = jnp.maximum(pre @ params["w1"] + params["c1"], 0.0)
    f = h1 @ params["w2"] + params["c2"]
    final = pre + f if prenorm else ln(pre + f, params["g2"], params["b2"])
    return final, attn


if __name__ == "__main__":
    def run_case(B, S, D, H, DFF, atol, rtol):
        ks = jax.random.split(jax.random.PRNGKey(0), 18)

        def init(k, shape, scale=0.1):
            return (scale * jax.random.normal(k, shape)).astype(jnp.float32)

        params = dict(
            g1=(1.0 + init(ks[0], (1, D))), b1=init(ks[1], (1, D)),
            g2=(1.0 + init(ks[2], (1, D))), b2=init(ks[3], (1, D)),
            wq=init(ks[4], (D, D)), bq=init(ks[5], (1, D)),
            wk=init(ks[6], (D, D)), bk=init(ks[7], (1, D)),
            wv=init(ks[8], (D, D)), bv=init(ks[9], (1, D)),
            wo=init(ks[10], (D, D)), bo=init(ks[11], (1, D)),
            w1=init(ks[12], (D, DFF)), c1=init(ks[13], (1, DFF)),
            w2=init(ks[14], (DFF, D)), c2=init(ks[15], (1, D)),
        )
        x = jax.random.normal(ks[16], (B, S, D), jnp.float32)
        # unidirectional (causal) attention mask: 1.0 where future positions are masked
        causal = jnp.triu(jnp.ones((S, S), jnp.float32), k=1)
        attn_mask = jnp.broadcast_to(causal, (B, S, S))

        for PRENORM in (False, True):
            out, attn = uni_encoder_block(x, attn_mask, params, num_heads=H, prenorm=PRENORM)
            jax.block_until_ready((out, attn))

            out_ref, attn_ref = reference(x, attn_mask, params, num_heads=H, prenorm=PRENORM)
            assert out.shape == (B, S, D) and attn.shape == (B, H, S, S)
            assert jnp.allclose(out, out_ref, atol=atol, rtol=rtol), \
                f"output mismatch (prenorm={PRENORM}, S={S}, D={D})"
            assert jnp.allclose(attn, attn_ref, atol=atol, rtol=rtol), \
                f"attn mismatch (prenorm={PRENORM}, S={S}, D={D})"

    # tiny config (single q tile) and a 128-aligned config (exercises the tiled-query path)
    run_case(2, 8, 32, 4, 64, atol=2e-2, rtol=2e-2)
    run_case(2, 256, 128, 4, 256, atol=5e-2, rtol=5e-2)

    print("KERNEL_OK")
</pallas_src>

<mosaic_0001>
module attributes {stable_mosaic.version = 11 : i64} {
  func.func @kernel(%arg0: i32, %arg1: i32, %arg2: memref<1x8x32xf32, #tpu.memory_space<vmem>>, %arg3: memref<1x8x8xbf16, #tpu.memory_space<vmem>>, %arg4: memref<1x32xf32, #tpu.memory_space<vmem>>, %arg5: memref<1x32xf32, #tpu.memory_space<vmem>>, %arg6: memref<1x32xf32, #tpu.memory_space<vmem>>, %arg7: memref<1x32xf32, #tpu.memory_space<vmem>>, %arg8: memref<32x32xbf16, #tpu.memory_space<vmem>>, %arg9: memref<1x32xf32, #tpu.memory_space<vmem>>, %arg10: memref<32x64xbf16, #tpu.memory_space<vmem>>, %arg11: memref<1x64xf32, #tpu.memory_space<vmem>>, %arg12: memref<32x32xbf16, #tpu.memory_space<vmem>>, %arg13: memref<1x32xf32, #tpu.memory_space<vmem>>, %arg14: memref<32x64xbf16, #tpu.memory_space<vmem>>, %arg15: memref<1x64xf32, #tpu.memory_space<vmem>>, %arg16: memref<64x32xbf16, #tpu.memory_space<vmem>>, %arg17: memref<1x32xf32, #tpu.memory_space<vmem>>, %arg18: memref<1x8x32xf32, #tpu.memory_space<vmem>>, %arg19: memref<1x4x8x8xf32, #tpu.memory_space<vmem>>, %arg20: memref<4x8x8xbf16, #tpu.memory_space<vmem>>, %arg21: memref<4x8x8xbf16, #tpu.memory_space<vmem>>) attributes {dimension_semantics = [#tpu.dimension_semantics<parallel>, #tpu.dimension_semantics<arbitrary>], iteration_bounds = array<i64: 2, 1>, scalar_prefetch = 0 : i64, scratch_operands = 2 : i64, tpu.core_type = #tpu.core_type<tc>, window_params = [{transform_indices = @transform_0, window_bounds = array<i64: 1, 8, 32>}, {transform_indices = @transform_1, window_bounds = array<i64: 1, 8, 8>}, {pipeline_mode = #tpu.pipeline_mode<synchronous>, transform_indices = @transform_2, window_bounds = array<i64: 1, 32>}, {pipeline_mode = #tpu.pipeline_mode<synchronous>, transform_indices = @transform_3, window_bounds = array<i64: 1, 32>}, {pipeline_mode = #tpu.pipeline_mode<synchronous>, transform_indices = @transform_4, window_bounds = array<i64: 1, 32>}, {pipeline_mode = #tpu.pipeline_mode<synchronous>, transform_indices = @transform_5, window_bounds = array<i64: 1, 32>}, {pipeline_mode = #tpu.pipeline_mode<synchronous>, transform_indices = @transform_6, window_bounds = array<i64: 32, 32>}, {pipeline_mode = #tpu.pipeline_mode<synchronous>, transform_indices = @transform_7, window_bounds = array<i64: 1, 32>}, {pipeline_mode = #tpu.pipeline_mode<synchronous>, transform_indices = @transform_8, window_bounds = array<i64: 32, 64>}, {pipeline_mode = #tpu.pipeline_mode<synchronous>, transform_indices = @transform_9, window_bounds = array<i64: 1, 64>}, {pipeline_mode = #tpu.pipeline_mode<synchronous>, transform_indices = @transform_10, window_bounds = array<i64: 32, 32>}, {pipeline_mode = #tpu.pipeline_mode<synchronous>, transform_indices = @transform_11, window_bounds = array<i64: 1, 32>}, {pipeline_mode = #tpu.pipeline_mode<synchronous>, transform_indices = @transform_12, window_bounds = array<i64: 32, 64>}, {pipeline_mode = #tpu.pipeline_mode<synchronous>, transform_indices = @transform_13, window_bounds = array<i64: 1, 64>}, {pipeline_mode = #tpu.pipeline_mode<synchronous>, transform_indices = @transform_14, window_bounds = array<i64: 64, 32>}, {pipeline_mode = #tpu.pipeline_mode<synchronous>, transform_indices = @transform_15, window_bounds = array<i64: 1, 32>}, {transform_indices = @transform_16, window_bounds = array<i64: 1, 8, 32>}, {transform_indices = @transform_17, window_bounds = array<i64: 1, 4, 8, 8>}]} {
    %c0 = arith.constant 0 : index
    %c0_0 = arith.constant 0 : index
    %0 = vector.load %arg4[%c0, %c0_0] : memref<1x32xf32, #tpu.memory_space<vmem>>, vector<1x32xf32>
    %1 = vector.shape_cast %0 : vector<1x32xf32> to vector<32xf32>
    %c0_1 = arith.constant 0 : index
    %c0_2 = arith.constant 0 : index
    %2 = vector.load %arg5[%c0_1, %c0_2] : memref<1x32xf32, #tpu.memory_space<vmem>>, vector<1x32xf32>
    %3 = vector.shape_cast %2 : vector<1x32xf32> to vector<32xf32>
    %c0_3 = arith.constant 0 : index
    %c0_4 = arith.constant 0 : index
    %4 = vector.load %arg6[%c0_3, %c0_4] : memref<1x32xf32, #tpu.memory_space<vmem>>, vector<1x32xf32>
    %5 = vector.shape_cast %4 : vector<1x32xf32> to vector<32xf32>
    %c0_5 = arith.constant 0 : index
    %c0_6 = arith.constant 0 : index
    %6 = vector.load %arg7[%c0_5, %c0_6] : memref<1x32xf32, #tpu.memory_space<vmem>>, vector<1x32xf32>
    %7 = vector.shape_cast %6 : vector<1x32xf32> to vector<32xf32>
    %c0_i32 = arith.constant 0 : i32
    %8 = arith.cmpi eq, %arg1, %c0_i32 : i32
    %9 = arith.extui %8 : i1 to i32
    %c0_i32_7 = arith.constant 0 : i32
    %10 = arith.cmpi ne, %9, %c0_i32_7 : i32
    scf.if %10 {
      %c0_63 = arith.constant 0 : index
      %c0_64 = arith.constant 0 : index
      %c0_65 = arith.constant 0 : index
      %137 = vector.load %arg2[%c0_63, %c0_64, %c0_65] : memref<1x8x32xf32, #tpu.memory_space<vmem>>, vector<1x8x32xf32>
      %138 = vector.shape_cast %137 : vector<1x8x32xf32> to vector<8x32xf32>
      %139 = arith.truncf %138 : vector<8x32xf32> to vector<8x32xbf16>
      %c0_66 = arith.constant 0 : index
      %c0_67 = arith.constant 0 : index
      %140 = vector.load %arg10[%c0_66, %c0_67] : memref<32x64xbf16, #tpu.memory_space<vmem>>, vector<32x64xbf16>
      %cst_68 = arith.constant dense<0.000000e+00> : vector<8x64xf32>
      %141 = tpu.matmul %139, %140, %cst_68 {dimension_numbers = #tpu.dot_dimension_numbers<[1], [0], [0], [1], [0, 0, 1, 1], [], []>} : vector<8x32xbf16>, vector<32x64xbf16>, vector<8x64xf32> -> vector<8x64xf32>
      %c0_69 = arith.constant 0 : index
      %c0_70 = arith.constant 0 : index
      %142 = vector.load %arg11[%c0_69, %c0_70] : memref<1x64xf32, #tpu.memory_space<vmem>>, vector<1x64xf32>
      %143 = vector.shape_cast %142 : vector<1x64xf32> to vector<64xf32>
      %144 = vector.shape_cast %143 : vector<64xf32> to vector<1x64xf32>
      %145 = vector.broadcast %144 : vector<1x64xf32> to vector<8x64xf32>
      %146 = arith.addf %141, %145 : vector<8x64xf32>
      %147 = vector.extract_strided_slice %146 {offsets = [0, 0], sizes = [8, 32], strides = [1, 1]} : vector<8x64xf32> to vector<8x32xf32>
      %148 = vector.extract_strided_slice %146 {offsets = [0, 32], sizes = [8, 32], strides = [1, 1]} : vector<8x64xf32> to vector<8x32xf32>
      %149 = vector.shape_cast %147 : vector<8x32xf32> to vector<8x4x8xf32>
      %150 = tpu.transpose %149, [1, 0, 2] : vector<8x4x8xf32> -> vector<4x8x8xf32>
      %151 = arith.truncf %150 : vector<4x8x8xf32> to vector<4x8x8xbf16>
      %c0_71 = arith.constant 0 : index
      %c0_72 = arith.constant 0 : index
      %c0_73 = arith.constant 0 : index
      %152 = vector.load %arg20[%c0_71, %c0_72, %c0_73] : memref<4x8x8xbf16, #tpu.memory_space<vmem>>, vector<4x8x8xbf16>
      tpu.vector_store %arg20[%c0_71, %c0_72, %c0_73], %151 {strides = array<i32>} : memref<4x8x8xbf16, #tpu.memory_space<vmem>>, vector<4x8x8xbf16>,
      %153 = vector.shape_cast %148 : vector<8x32xf32> to vector<8x4x8xf32>
      %154 = tpu.transpose %153, [1, 0, 2] : vector<8x4x8xf32> -> vector<4x8x8xf32>
      %155 = arith.truncf %154 : vector<4x8x8xf32> to vector<4x8x8xbf16>
      %c0_74 = arith.constant 0 : index
      %c0_75 = arith.constant 0 : index
      %c0_76 = arith.constant 0 : index
      %156 = vector.load %arg21[%c0_74, %c0_75, %c0_76] : memref<4x8x8xbf16, #tpu.memory_space<vmem>>, vector<4x8x8xbf16>
      tpu.vector_store %arg21[%c0_74, %c0_75, %c0_76], %155 {strides = array<i32>} : memref<4x8x8xbf16, #tpu.memory_space<vmem>>, vector<4x8x8xbf16>,
    } else {
    }
    %c8_i32 = arith.constant 8 : i32
    %11 = arith.muli %arg1, %c8_i32 : i32
    %12 = tpu.assume_multiple %11, 8 : i32
    %c0_8 = arith.constant 0 : index
    %13 = arith.index_cast %12 : i32 to index
    %c0_9 = arith.constant 0 : index
    %14 = vector.load %arg2[%c0_8, %13, %c0_9] : memref<1x8x32xf32, #tpu.memory_space<vmem>>, vector<1x8x32xf32>
    %15 = vector.shape_cast %14 : vector<1x8x32xf32> to vector<8x32xf32>
    %16 = arith.truncf %15 : vector<8x32xf32> to vector<8x32xbf16>
    %c0_10 = arith.constant 0 : index
    %c0_11 = arith.constant 0 : index
    %17 = vector.load %arg8[%c0_10, %c0_11] : memref<32x32xbf16, #tpu.memory_space<vmem>>, vector<32x32xbf16>
    %cst = arith.constant dense<0.000000e+00> : vector<8x32xf32>
    %18 = tpu.matmul %16, %17, %cst {dimension_numbers = #tpu.dot_dimension_numbers<[1], [0], [0], [1], [0, 0, 1, 1], [], []>} : vector<8x32xbf16>, vector<32x32xbf16>, vector<8x32xf32> -> vector<8x32xf32>
    %c0_12 = arith.constant 0 : index
    %c0_13 = arith.constant 0 : index
    %19 = vector.load %arg9[%c0_12, %c0_13] : memref<1x32xf32, #tpu.memory_space<vmem>>, vector<1x32xf32>
    %20 = vector.shape_cast %19 : vector<1x32xf32> to vector<32xf32>
    %21 = vector.shape_cast %20 : vector<32xf32> to vector<1x32xf32>
    %22 = vector.broadcast %21 : vector<1x32xf32> to vector<8x32xf32>
    %23 = arith.addf %18, %22 : vector<8x32xf32>
    %cst_14 = arith.constant 0.353553385 : f32
    %24 = vector.broadcast %cst_14 : f32 to vector<8x32xf32>
    %25 = arith.mulf %23, %24 : vector<8x32xf32>
    %26 = vector.shape_cast %25 : vector<8x32xf32> to vector<8x4x8xf32>
    %27 = tpu.transpose %26, [1, 0, 2] : vector<8x4x8xf32> -> vector<4x8x8xf32>
    %28 = arith.truncf %27 : vector<4x8x8xf32> to vector<4x8x8xbf16>
    %c0_15 = arith.constant 0 : index
    %c0_16 = arith.constant 0 : index
    %c0_17 = arith.constant 0 : index
    %29 = vector.load %arg20[%c0_15, %c0_16, %c0_17] : memref<4x8x8xbf16, #tpu.memory_space<vmem>>, vector<4x8x8xbf16>
    "tpu.trace_start"() <{level = 10 : i32, message = "hqd,hkd->hqk"}> : () -> ()
    %cst_18 = arith.constant dense<0.000000e+00> : vector<4x8x8xf32>
    %30 = tpu.matmul %28, %29, %cst_18 {dimension_numbers = #tpu.dot_dimension_numbers<[2], [2], [1], [1], [0, 0, 0, 1, 1, 1], [0], [0]>} : vector<4x8x8xbf16>, vector<4x8x8xbf16>, vector<4x8x8xf32> -> vector<4x8x8xf32>
    "tpu.trace_stop"() : () -> ()
    %c0_19 = arith.constant 0 : index
    %c0_20 = arith.constant 0 : index
    %c0_21 = arith.constant 0 : index
    %31 = vector.load %arg3[%c0_19, %c0_20, %c0_21] : memref<1x8x8xbf16, #tpu.memory_space<vmem>>, vector<1x8x8xbf16>
    %32 = vector.shape_cast %31 : vector<1x8x8xbf16> to vector<8x8xbf16>
    %33 = vector.shape_cast %32 : vector<8x8xbf16> to vector<1x8x8xbf16>
    %cst_22 = arith.constant 0.000000e+00 : bf16
    %34 = vector.broadcast %cst_22 : bf16 to vector<1x8x8xbf16>
    %35 = arith.cmpf ogt, %33, %34 : vector<1x8x8xbf16>
    %cst_23 = arith.constant -1.000000e+04 : f32
    %36 = vector.shape_cast %35 : vector<1x8x8xi1> to vector<1x8x8xi1>
    %37 = vector.broadcast %36 : vector<1x8x8xi1> to vector<4x8x8xi1>
    %38 = vector.broadcast %cst_23 : f32 to vector<4x8x8xf32>
    %39 = arith.select %37, %38, %30 : vector<4x8x8xi1>, vector<4x8x8xf32>
    %cst_24 = arith.constant dense<0xFF800000> : vector<4x8xf32>
    %40 = vector.multi_reduction <maximumf>, %39, %cst_24 [2] : vector<4x8x8xf32> to vector<4x8xf32>
    %41 = vector.shape_cast %40 : vector<4x8xf32> to vector<4x8x1xf32>
    %42 = vector.broadcast %41 : vector<4x8x1xf32> to vector<4x8x8xf32>
    %43 = arith.subf %39, %42 : vector<4x8x8xf32>
    %44 = math.exp %43 : vector<4x8x8xf32>
    %cst_25 = arith.constant dense<0.000000e+00> : vector<4x8xf32>
    %45 = vector.multi_reduction <add>, %44, %cst_25 [2] : vector<4x8x8xf32> to vector<4x8xf32>
    %46 = vector.shape_cast %45 : vector<4x8xf32> to vector<4x8x1xf32>
    %47 = tpu.reciprocal %46 {approx = true} : vector<4x8x1xf32> -> vector<4x8x1xf32>
    %48 = vector.broadcast %47 : vector<4x8x1xf32> to vector<4x8x8xf32>
    %49 = arith.mulf %44, %48 : vector<4x8x8xf32>
    %c0_26 = arith.constant 0 : index
    %c0_27 = arith.constant 0 : index
    %c0_28 = arith.constant 0 : index
    %c0_29 = arith.constant 0 : index
    %50 = vector.load %arg19[%c0_26, %c0_27, %c0_28, %c0_29] : memref<1x4x8x8xf32, #tpu.memory_space<vmem>>, vector<1x4x8x8xf32>
    %51 = vector.shape_cast %50 : vector<1x4x8x8xf32> to vector<4x8x8xf32>
    %52 = vector.shape_cast %49 : vector<4x8x8xf32> to vector<1x4x8x8xf32>
    tpu.vector_store %arg19[%c0_26, %c0_27, %c0_28, %c0_29], %52 {strides = array<i32>} : memref<1x4x8x8xf32, #tpu.memory_space<vmem>>, vector<1x4x8x8xf32>,
    %53 = arith.truncf %49 : vector<4x8x8xf32> to vector<4x8x8xbf16>
    %c0_30 = arith.constant 0 : index
    %c0_31 = arith.constant 0 : index
    %c0_32 = arith.constant 0 : index
    %54 = vector.load %arg21[%c0_30, %c0_31, %c0_32] : memref<4x8x8xbf16, #tpu.memory_space<vmem>>, vector<4x8x8xbf16>
    "tpu.trace_start"() <{level = 10 : i32, message = "hqk,hkd->hqd"}> : () -> ()
    %cst_33 = arith.constant dense<0.000000e+00> : vector<4x8x8xf32>
    %55 = tpu.matmul %53, %54, %cst_33 {dimension_numbers = #tpu.dot_dimension_numbers<[2], [1], [1], [2], [0, 0, 0, 1, 1, 2], [0], [0]>} : vector<4x8x8xbf16>, vector<4x8x8xbf16>, vector<4x8x8xf32> -> vector<4x8x8xf32>
    "tpu.trace_stop"() : () -> ()
    %56 = tpu.transpose %55, [1, 0, 2] : vector<4x8x8xf32> -> vector<8x4x8xf32>
    %57 = vector.shape_cast %56 : vector<8x4x8xf32> to vector<8x32xf32>
    %58 = arith.truncf %57 : vector<8x32xf32> to vector<8x32xbf16>
    %c0_34 = arith.constant 0 : index
    %c0_35 = arith.constant 0 : index
    %59 = vector.load %arg12[%c0_34, %c0_35] : memref<32x32xbf16, #tpu.memory_space<vmem>>, vector<32x32xbf16>
    %cst_36 = arith.constant dense<0.000000e+00> : vector<8x32xf32>
    %60 = tpu.matmul %58, %59, %cst_36 {dimension_numbers = #tpu.dot_dimension_numbers<[1], [0], [0], [1], [0, 0, 1, 1], [], []>} : vector<8x32xbf16>, vector<32x32xbf16>, vector<8x32xf32> -> vector<8x32xf32>
    %c0_37 = arith.constant 0 : index
    %c0_38 = arith.constant 0 : index
    %61 = vector.load %arg13[%c0_37, %c0_38] : memref<1x32xf32, #tpu.memory_space<vmem>>, vector<1x32xf32>
    %62 = vector.shape_cast %61 : vector<1x32xf32> to vector<32xf32>
    %63 = vector.shape_cast %62 : vector<32xf32> to vector<1x32xf32>
    %64 = vector.broadcast %63 : vector<1x32xf32> to vector<8x32xf32>
    %65 = arith.addf %60, %64 : vector<8x32xf32>
    %66 = arith.addf %15, %65 : vector<8x32xf32>
    %cst_39 = arith.constant dense<0.000000e+00> : vector<8xf32>
    %67 = vector.multi_reduction <add>, %66, %cst_39 [1] : vector<8x32xf32> to vector<8xf32>
    %68 = vector.shape_cast %67 : vector<8xf32> to vector<8x1xf32>
    %cst_40 = arith.constant 3.200000e+01 : f32
    %69 = vector.broadcast %cst_40 : f32 to vector<8x1xf32>
    %70 = arith.divf %68, %69 : vector<8x1xf32>
    %71 = vector.broadcast %70 : vector<8x1xf32> to vector<8x32xf32>
    %72 = arith.subf %66, %71 : vector<8x32xf32>
    %73 = arith.mulf %72, %72 : vector<8x32xf32>
    %cst_41 = arith.constant dense<0.000000e+00> : vector<8xf32>
    %74 = vector.multi_reduction <add>, %73, %cst_41 [1] : vector<8x32xf32> to vector<8xf32>
    %75 = vector.shape_cast %74 : vector<8xf32> to vector<8x1xf32>
    %cst_42 = arith.constant 3.200000e+01 : f32
    %76 = vector.broadcast %cst_42 : f32 to vector<8x1xf32>
    %77 = arith.divf %75, %76 : vector<8x1xf32>
    %78 = vector.broadcast %70 : vector<8x1xf32> to vector<8x32xf32>
    %79 = arith.subf %66, %78 : vector<8x32xf32>
    %cst_43 = arith.constant 9.99999974E-6 : f32
    %80 = vector.broadcast %cst_43 : f32 to vector<8x1xf32>
    %81 = arith.addf %77, %80 : vector<8x1xf32>
    %82 = math.rsqrt %81 : vector<8x1xf32>
    %83 = vector.broadcast %82 : vector<8x1xf32> to vector<8x32xf32>
    %84 = arith.mulf %79, %83 : vector<8x32xf32>
    %85 = vector.shape_cast %1 : vector<32xf32> to vector<1x32xf32>
    %86 = vector.broadcast %85 : vector<1x32xf32> to vector<8x32xf32>
    %87 = arith.mulf %84, %86 : vector<8x32xf32>
    %88 = vector.shape_cast %3 : vector<32xf32> to vector<1x32xf32>
    %89 = vector.broadcast %88 : vector<1x32xf32> to vector<8x32xf32>
    %90 = arith.addf %87, %89 : vector<8x32xf32>
    %91 = arith.truncf %90 : vector<8x32xf32> to vector<8x32xbf16>
    %c0_44 = arith.constant 0 : index
    %c0_45 = arith.constant 0 : index
    %92 = vector.load %arg14[%c0_44, %c0_45] : memref<32x64xbf16, #tpu.memory_space<vmem>>, vector<32x64xbf16>
    %cst_46 = arith.constant dense<0.000000e+00> : vector<8x64xf32>
    %93 = tpu.matmul %91, %92, %cst_46 {dimension_numbers = #tpu.dot_dimension_numbers<[1], [0], [0], [1], [0, 0, 1, 1], [], []>} : vector<8x32xbf16>, vector<32x64xbf16>, vector<8x64xf32> -> vector<8x64xf32>
    %c0_47 = arith.constant 0 : index
    %c0_48 = arith.constant 0 : index
    %94 = vector.load %arg15[%c0_47, %c0_48] : memref<1x64xf32, #tpu.memory_space<vmem>>, vector<1x64xf32>
    %95 = vector.shape_cast %94 : vector<1x64xf32> to vector<64xf32>
    %96 = vector.shape_cast %95 : vector<64xf32> to vector<1x64xf32>
    %97 = vector.broadcast %96 : vector<1x64xf32> to vector<8x64xf32>
    %98 = arith.addf %93, %97 : vector<8x64xf32>
    %cst_49 = arith.constant 0.000000e+00 : f32
    %99 = vector.broadcast %cst_49 : f32 to vector<8x64xf32>
    %100 = arith.maximumf %98, %99 : vector<8x64xf32>
    %101 = arith.truncf %100 : vector<8x64xf32> to vector<8x64xbf16>
    %c0_50 = arith.constant 0 : index
    %c0_51 = arith.constant 0 : index
    %102 = vector.load %arg16[%c0_50, %c0_51] : memref<64x32xbf16, #tpu.memory_space<vmem>>, vector<64x32xbf16>
    %cst_52 = arith.constant dense<0.000000e+00> : vector<8x32xf32>
    %103 = tpu.matmul %101, %102, %cst_52 {dimension_numbers = #tpu.dot_dimension_numbers<[1], [0], [0], [1], [0, 0, 1, 1], [], []>} : vector<8x64xbf16>, vector<64x32xbf16>, vector<8x32xf32> -> vector<8x32xf32>
    %c0_53 = arith.constant 0 : index
    %c0_54 = arith.constant 0 : index
    %104 = vector.load %arg17[%c0_53, %c0_54] : memref<1x32xf32, #tpu.memory_space<vmem>>, vector<1x32xf32>
    %105 = vector.shape_cast %104 : vector<1x32xf32> to vector<32xf32>
    %106 = vector.shape_cast %105 : vector<32xf32> to vector<1x32xf32>
    %107 = vector.broadcast %106 : vector<1x32xf32> to vector<8x32xf32>
    %108 = arith.addf %103, %107 : vector<8x32xf32>
    %109 = arith.addf %90, %108 : vector<8x32xf32>
    %cst_55 = arith.constant dense<0.000000e+00> : vector<8xf32>
    %110 = vector.multi_reduction <add>, %109, %cst_55 [1] : vector<8x32xf32> to vector<8xf32>
    %111 = vector.shape_cast %110 : vector<8xf32> to vector<8x1xf32>
    %cst_56 = arith.constant 3.200000e+01 : f32
    %112 = vector.broadcast %cst_56 : f32 to vector<8x1xf32>
    %113 = arith.divf %111, %112 : vector<8x1xf32>
    %114 = vector.broadcast %113 : vector<8x1xf32> to vector<8x32xf32>
    %115 = arith.subf %109, %114 : vector<8x32xf32>
    %116 = arith.mulf %115, %115 : vector<8x32xf32>
    %cst_57 = arith.constant dense<0.000000e+00> : vector<8xf32>
    %117 = vector.multi_reduction <add>, %116, %cst_57 [1] : vector<8x32xf32> to vector<8xf32>
    %118 = vector.shape_cast %117 : vector<8xf32> to vector<8x1xf32>
    %cst_58 = arith.constant 3.200000e+01 : f32
    %119 = vector.broadcast %cst_58 : f32 to vector<8x1xf32>
    %120 = arith.divf %118, %119 : vector<8x1xf32>
    %121 = vector.broadcast %113 : vector<8x1xf32> to vector<8x32xf32>
    %122 = arith.subf %109, %121 : vector<8x32xf32>
    %cst_59 = arith.constant 9.99999974E-6 : f32
    %123 = vector.broadcast %cst_59 : f32 to vector<8x1xf32>
    %124 = arith.addf %120, %123 : vector<8x1xf32>
    %125 = math.rsqrt %124 : vector<8x1xf32>
    %126 = vector.broadcast %125 : vector<8x1xf32> to vector<8x32xf32>
    %127 = arith.mulf %122, %126 : vector<8x32xf32>
    %128 = vector.shape_cast %5 : vector<32xf32> to vector<1x32xf32>
    %129 = vector.broadcast %128 : vector<1x32xf32> to vector<8x32xf32>
    %130 = arith.mulf %127, %129 : vector<8x32xf32>
    %131 = vector.shape_cast %7 : vector<32xf32> to vector<1x32xf32>
    %132 = vector.broadcast %131 : vector<1x32xf32> to vector<8x32xf32>
    %133 = arith.addf %130, %132 : vector<8x32xf32>
    %c0_60 = arith.constant 0 : index
    %c0_61 = arith.constant 0 : index
    %c0_62 = arith.constant 0 : index
    %134 = vector.load %arg18[%c0_60, %c0_61, %c0_62] : memref<1x8x32xf32, #tpu.memory_space<vmem>>, vector<1x8x32xf32>
    %135 = vector.shape_cast %134 : vector<1x8x32xf32> to vector<8x32xf32>
    %136 = vector.shape_cast %133 : vector<8x32xf32> to vector<1x8x32xf32>
    tpu.vector_store %arg18[%c0_60, %c0_61, %c0_62], %136 {strides = array<i32>} : memref<1x8x32xf32, #tpu.memory_space<vmem>>, vector<1x8x32xf32>,
    return
  }
  func.func @transform_0(%arg0: i32, %arg1: i32) -> (i32, i32, i32) {
    %c0_i32 = arith.constant 0 : i32
    %c0_i32_0 = arith.constant 0 : i32
    %c0_i32_1 = arith.constant 0 : i32
    return %arg0, %c0_i32, %c0_i32_0 : i32, i32, i32
  }
  func.func @transform_1(%arg0: i32, %arg1: i32) -> (i32, i32, i32) {
    %c0_i32 = arith.constant 0 : i32
    %c0_i32_0 = arith.constant 0 : i32
    return %arg0, %arg1, %c0_i32 : i32, i32, i32
  }
  func.func @transform_2(%arg0: i32, %arg1: i32) -> (i32, i32) {
    %c0_i32 = arith.constant 0 : i32
    %c0_i32_0 = arith.constant 0 : i32
    %c0_i32_1 = arith.constant 0 : i32
    return %c0_i32, %c0_i32_0 : i32, i32
  }
  func.func @transform_3(%arg0: i32, %arg1: i32) -> (i32, i32) {
    %c0_i32 = arith.constant 0 : i32
    %c0_i32_0 = arith.constant 0 : i32
    %c0_i32_1 = arith.constant 0 : i32
    return %c0_i32, %c0_i32_0 : i32, i32
  }
  func.func @transform_4(%arg0: i32, %arg1: i32) -> (i32, i32) {
    %c0_i32 = arith.constant 0 : i32
    %c0_i32_0 = arith.constant 0 : i32
    %c0_i32_1 = arith.constant 0 : i32
    return %c0_i32, %c0_i32_0 : i32, i32
  }
  func.func @transform_5(%arg0: i32, %arg1: i32) -> (i32, i32) {
    %c0_i32 = arith.constant 0 : i32
    %c0_i32_0 = arith.constant 0 : i32
    %c0_i32_1 = arith.constant 0 : i32
    return %c0_i32, %c0_i32_0 : i32, i32
  }
  func.func @transform_6(%arg0: i32, %arg1: i32) -> (i32, i32) {
    %c0_i32 = arith.constant 0 : i32
    %c0_i32_0 = arith.constant 0 : i32
    %c0_i32_1 = arith.constant 0 : i32
    return %c0_i32, %c0_i32_0 : i32, i32
  }
  func.func @transform_7(%arg0: i32, %arg1: i32) -> (i32, i32) {
    %c0_i32 = arith.constant 0 : i32
    %c0_i32_0 = arith.constant 0 : i32
    %c0_i32_1 = arith.constant 0 : i32
    return %c0_i32, %c0_i32_0 : i32, i32
  }
  func.func @transform_8(%arg0: i32, %arg1: i32) -> (i32, i32) {
    %c0_i32 = arith.constant 0 : i32
    %c0_i32_0 = arith.constant 0 : i32
    %c0_i32_1 = arith.constant 0 : i32
    return %c0_i32, %c0_i32_0 : i32, i32
  }
  func.func @transform_9(%arg0: i32, %arg1: i32) -> (i32, i32) {
    %c0_i32 = arith.constant 0 : i32
    %c0_i32_0 = arith.constant 0 : i32
    %c0_i32_1 = arith.constant 0 : i32
    return %c0_i32, %c0_i32_0 : i32, i32
  }
  func.func @transform_10(%arg0: i32, %arg1: i32) -> (i32, i32) {
    %c0_i32 = arith.constant 0 : i32
    %c0_i32_0 = arith.constant 0 : i32
    %c0_i32_1 = arith.constant 0 : i32
    return %c0_i32, %c0_i32_0 : i32, i32
  }
  func.func @transform_11(%arg0: i32, %arg1: i32) -> (i32, i32) {
    %c0_i32 = arith.constant 0 : i32
    %c0_i32_0 = arith.constant 0 : i32
    %c0_i32_1 = arith.constant 0 : i32
    return %c0_i32, %c0_i32_0 : i32, i32
  }
  func.func @transform_12(%arg0: i32, %arg1: i32) -> (i32, i32) {
    %c0_i32 = arith.constant 0 : i32
    %c0_i32_0 = arith.constant 0 : i32
    %c0_i32_1 = arith.constant 0 : i32
    return %c0_i32, %c0_i32_0 : i32, i32
  }
  func.func @transform_13(%arg0: i32, %arg1: i32) -> (i32, i32) {
    %c0_i32 = arith.constant 0 : i32
    %c0_i32_0 = arith.constant 0 : i32
    %c0_i32_1 = arith.constant 0 : i32
    return %c0_i32, %c0_i32_0 : i32, i32
  }
  func.func @transform_14(%arg0: i32, %arg1: i32) -> (i32, i32) {
    %c0_i32 = arith.constant 0 : i32
    %c0_i32_0 = arith.constant 0 : i32
    %c0_i32_1 = arith.constant 0 : i32
    return %c0_i32, %c0_i32_0 : i32, i32
  }
  func.func @transform_15(%arg0: i32, %arg1: i32) -> (i32, i32) {
    %c0_i32 = arith.constant 0 : i32
    %c0_i32_0 = arith.constant 0 : i32
    %c0_i32_1 = arith.constant 0 : i32
    return %c0_i32, %c0_i32_0 : i32, i32
  }
  func.func @transform_16(%arg0: i32, %arg1: i32) -> (i32, i32, i32) {
    %c0_i32 = arith.constant 0 : i32
    %c0_i32_0 = arith.constant 0 : i32
    return %arg0, %arg1, %c0_i32 : i32, i32, i32
  }
  func.func @transform_17(%arg0: i32, %arg1: i32) -> (i32, i32, i32, i32) {
    %c0_i32 = arith.constant 0 : i32
    %c0_i32_0 = arith.constant 0 : i32
    %c0_i32_1 = arith.constant 0 : i32
    return %arg0, %c0_i32, %arg1, %c0_i32_0 : i32, i32, i32, i32
  }
}

</mosaic_0001>

<llo_original>
// kernel: tpu_custom_call.1
$region0: #{tpu_custom_call.1}
  #allocation0 [shape = 'u32[]', space=smem, size = 0x4, offset = 0x4, fixed_abs, tag = 'smem constant byte address 0x4 - core index']
  #allocation1 [shape = 'u32[72,128]{1,0:T(1,128)}', space=vmem, size = 0x9000, scoped, tag = 'internal scratch']
  #allocation2 [shape = 'bf16[4,8,8]{2,1,0:T(8,128)(2,1)}', space=vmem, size = 0x2000, scoped, tag = 'scratch operand']
  #allocation3 [shape = 'bf16[4,8,8]{2,1,0:T(8,128)(2,1)}', space=vmem, size = 0x2000, scoped, tag = 'scratch operand']
  %s0 = inlined_call_operand.vmem [shape: f32[2,8,32], index: 0, kind: input, shape index: {}]
  %s1 = inlined_call_operand.hbm [shape: bf16[2,8,8], index: 1, kind: input, shape index: {}]
  %s2 = inlined_call_operand.vmem [shape: f32[1,32], index: 2, kind: input, shape index: {}]
  %s3 = inlined_call_operand.vmem [shape: f32[1,32], index: 3, kind: input, shape index: {}]
  %s4 = inlined_call_operand.vmem [shape: f32[1,32], index: 4, kind: input, shape index: {}]
  %s5 = inlined_call_operand.vmem [shape: f32[1,32], index: 5, kind: input, shape index: {}]
  %s6 = inlined_call_operand.vmem [shape: bf16[32,32], index: 6, kind: input, shape index: {}]
  %s7 = inlined_call_operand.vmem [shape: f32[1,32], index: 7, kind: input, shape index: {}]
  %s8 = inlined_call_operand.vmem [shape: bf16[32,64], index: 8, kind: input, shape index: {}]
  %s9 = inlined_call_operand.vmem [shape: f32[1,64], index: 9, kind: input, shape index: {}]
  %s10 = inlined_call_operand.hbm [shape: bf16[32,32], index: 10, kind: input, shape index: {}]
  %s11 = inlined_call_operand.vmem [shape: f32[1,32], index: 11, kind: input, shape index: {}]
  %s12 = inlined_call_operand.hbm [shape: bf16[32,64], index: 12, kind: input, shape index: {}]
  %s13 = inlined_call_operand.vmem [shape: f32[1,64], index: 13, kind: input, shape index: {}]
  %s14 = inlined_call_operand.vmem [shape: bf16[64,32], index: 14, kind: input, shape index: {}]
  %s15 = inlined_call_operand.vmem [shape: f32[1,32], index: 15, kind: input, shape index: {}]
  %s16 = inlined_call_operand.hbm [shape: f32[2,8,32], index: 16, kind: output, shape index: {0}]
  %s17 = inlined_call_operand.hbm [shape: f32[2,4,8,8], index: 17, kind: output, shape index: {1}]
  %18 = xla_tuple %s16, %s17
  %s19 = sld [smem:[#allocation0]]
  $region121: #{tpu_custom_call.1} parent=0
    _
  %s21 = ssub.s32 1, %s19
  %s22 = scalar_select 0, %s21, %s19
  $region1: #{tpu_custom_call.1} parent=0
    #allocation4 [shape = 'u8[4096]{0}', space=vmem, size = 0x1000, scoped, tag = 'input window, operand 1']
    #allocation5 [shape = 's32[2]{0}', space=sflag, size = 0x8, scoped, tag = 'scoped memory for tpu_custom_call.1']
    #allocation6 [shape = 's32[2]{0}', space=sflag, size = 0x8, scoped, tag = 'scoped memory for tpu_custom_call.1']
    #allocation7 [shape = 'u8[8192]{0}', space=vmem, size = 0x2000, scoped, tag = 'input window, operand 10, single buffered']
    #allocation8 [shape = 's32[1]{0}', space=sflag, size = 0x4, scoped, tag = 'scoped memory for tpu_custom_call.1']
    #allocation9 [shape = 'u8[8192]{0}', space=vmem, size = 0x2000, scoped, tag = 'input window, operand 12, single buffered']
    #allocation10 [shape = 'u8[8192]{0}', space=vmem, size = 0x2000, scoped, tag = 'output window, operand 0']
    #allocation11 [shape = 'u8[32768]{0}', space=vmem, size = 0x8000, scoped, tag = 'output window, operand 1']
    #allocation12 [shape = 's32[2]{0}', space=sflag, size = 0x8, scoped, tag = 'scoped memory for tpu_custom_call.1']
    %23 = vsyncpa [#allocation5], 0
    %s24 = scalar_lea.sflag [#allocation5], 1
    %25 = vsyncpa %s24, 0
    %26 = vsyncpa [#allocation8], 0
    %27 = vsyncpa [#allocation6], 0
    %s28 = scalar_lea.sflag [#allocation6], 1
    %29 = vsyncpa %s28, 0
    %30 = vsyncpa [#allocation12], 0
    %s31 = scalar_lea.sflag [#allocation12], 1
    %32 = vsyncpa %s31, 0
    loop: start=0, step=1, limit=4
    $region2: #{tpu_custom_call.1} parent=1 // loop_pre_header
      _
    $region3: #{tpu_custom_call.1} parent=1 // loop_header
      %s34 = sphi 0, %s38
      %p35 = scmp.ge.s32.totalorder %s34, 4
      %s41 = sphi 0, %s53
      %s42 = sphi 0, %s49
      %s43 = sphi 0, %s41
      %s44 = sphi 0, %s42
      %s45 = sphi 0, %s43
      %s46 = sphi 0, %s44
      %s56 = sphi 0, %s58
      %s59 = sphi 0, %s56
      %s60 = sphi 0, %s59
      %s76 = sphi 0, %s60
      %s84 = sphi 0, %s86
      %s87 = sphi 0, %s84
      %s88 = sphi 0, %s87
      %s104 = sphi 0, %s88
      %s108 = sphi 0, %s108
      %s110 = sphi 0, %s108
      %s111 = sphi 0, %s110
      %s125 = sphi 0, %s111
      %s129 = sphi 0, %s129
      %s131 = sphi 0, %s129
      %s132 = sphi 0, %s131
      %s146 = sphi 0, %s132
      %s150 = sphi 0, %s150
      %s152 = sphi 0, %s150
      %s153 = sphi 0, %s152
      %s167 = sphi 0, %s153
      %s171 = sphi 0, %s171
      %s173 = sphi 0, %s171
      %s174 = sphi 0, %s173
      %s188 = sphi 0, %s174
      %s192 = sphi 0, %s192
      %s194 = sphi 0, %s192
      %s195 = sphi 0, %s194
      %s209 = sphi 0, %s195
      %s213 = sphi 0, %s213
      %s215 = sphi 0, %s213
      %s216 = sphi 0, %s215
      %s230 = sphi 0, %s216
      %s234 = sphi 0, %s234
      %s236 = sphi 0, %s234
      %s237 = sphi 0, %s236
      %s251 = sphi 0, %s237
      %s255 = sphi 0, %s255
      %s257 = sphi 0, %s255
      %s258 = sphi 0, %s257
      %s272 = sphi 0, %s258
      %s276 = sphi 0, %s276
      %s278 = sphi 0, %s276
      %s279 = sphi 0, %s278
      %s293 = sphi 0, %s279
      %s297 = sphi 0, %s297
      %s299 = sphi 0, %s297
      %s300 = sphi 0, %s299
      %s314 = sphi 0, %s300
      %s318 = sphi 0, %s318
      %s320 = sphi 0, %s318
      %s321 = sphi 0, %s320
      %s335 = sphi 0, %s321
      %s339 = sphi 0, %s339
      %s341 = sphi 0, %s339
      %s342 = sphi 0, %s341
      %s356 = sphi 0, %s342
      %s360 = sphi 0, %s360
      %s362 = sphi 0, %s360
      %s363 = sphi 0, %s362
      %s377 = sphi 0, %s363
      %s381 = sphi 0, %s381
      %s383 = sphi 0, %s381
      %s384 = sphi 0, %s383
      %s398 = sphi 0, %s384
      %s406 = sphi 0, %s408
      %s409 = sphi 0, %s406
      %s410 = sphi 0, %s409
      %s426 = sphi 0, %s410
      %s434 = sphi 0, %s436
      %s437 = sphi 0, %s434
      %s438 = sphi 0, %s437
      %s454 = sphi 0, %s438
    $region4: #{tpu_custom_call.1} parent=1 // loop_header_branch
      %37 = sbr.rel (%p35) target = $region8
    $region5: #{tpu_custom_call.1} parent=1 // loop_body
      %s39 = ssub.s32 %s34, 1
      %s40 = ssub.s32 %s34, 2
      %s47 = sadd.s32 1, %s42
      %p48 = scmp.ge.s32.totalorder %s47, 1
      %s49 = scalar_select %p48, 0, %s47
      %s50 = sadd.s32 1, %s41
      %s51 = scalar_select %p48, %s50, %s41
      %p52 = scmp.ge.s32.totalorder %s51, 2
      %s53 = scalar_select %p52, 0, %s51
      %s54 = ssub.s32 %s41, %s53
      %p55 = scmp.eq.s32.totalorder %s54, 0
      %s57 = sadd.s32 %s56, 1
      %s58 = scalar_select %p55, %s56, %s57
      %p61 = pneg %p55
      %p62 = scmp.eq.s32.totalorder %s34, 1
      %p63 = por %p61, %p62
      %p64 = scmp.ne.s32.totalorder %s56, %s59
      %p65 = scmp.eq.s32.totalorder %s34, 0
      %p66 = por %p64, %p65
      %p67 = scmp.ne.s32.totalorder %s56, %s59
      %p68 = scmp.eq.s32.totalorder %s39, 1
      %p69 = por %p67, %p68
      %p70 = scmp.ne.s32.totalorder %s59, %s60
      %p71 = scmp.eq.s32.totalorder %s39, 0
      %p72 = por %p70, %p71
      %p73 = scmp.ne.s32.totalorder %s59, %s60
      %p74 = scmp.eq.s32.totalorder %s40, 1
      %p75 = por %p73, %p74
      %p77 = scmp.ne.s32.totalorder %s60, %s76
      %p78 = scmp.eq.s32.totalorder %s40, 0
      %p79 = por %p77, %p78
      %s80 = ssub.s32 %s41, %s53
      %s81 = ssub.s32 %s42, %s49
      %s82 = sor.u32 %s80, %s81
      %p83 = scmp.eq.s32.totalorder %s82, 0
      %s85 = sadd.s32 %s84, 1
      %s86 = scalar_select %p83, %s84, %s85
      %p89 = pneg %p83
      %p90 = scmp.eq.s32.totalorder %s34, 1
      %p91 = por %p89, %p90
      %p92 = scmp.ne.s32.totalorder %s84, %s87
      %p93 = scmp.eq.s32.totalorder %s34, 0
      %p94 = por %p92, %p93
      %p95 = scmp.ne.s32.totalorder %s84, %s87
      %p96 = scmp.eq.s32.totalorder %s39, 1
      %p97 = por %p95, %p96
      %p98 = scmp.ne.s32.totalorder %s87, %s88
      %p99 = scmp.eq.s32.totalorder %s39, 0
      %p100 = por %p98, %p99
      %p101 = scmp.ne.s32.totalorder %s87, %s88
      %p102 = scmp.eq.s32.totalorder %s40, 1
      %p103 = por %p101, %p102
      %p105 = scmp.ne.s32.totalorder %s88, %s104
      %p106 = scmp.eq.s32.totalorder %s40, 0
      %p107 = por %p105, %p106
      %s109 = sadd.s32 %s108, 1
      %p112 = scmp.eq.s32.totalorder %s34, 1
      %p113 = scmp.ne.s32.totalorder %s108, %s110
      %p114 = scmp.eq.s32.totalorder %s34, 0
      %p115 = por %p113, %p114
      %p116 = scmp.ne.s32.totalorder %s108, %s110
      %p117 = scmp.eq.s32.totalorder %s39, 1
      %p118 = por %p116, %p117
      %p119 = scmp.ne.s32.totalorder %s110, %s111
      %p120 = scmp.eq.s32.totalorder %s39, 0
      %p121 = por %p119, %p120
      %p122 = scmp.ne.s32.totalorder %s110, %s111
      %p123 = scmp.eq.s32.totalorder %s40, 1
      %p124 = por %p122, %p123
      %p126 = scmp.ne.s32.totalorder %s111, %s125
      %p127 = scmp.eq.s32.totalorder %s40, 0
      %p128 = por %p126, %p127
      %s130 = sadd.s32 %s129, 1
      %p133 = scmp.eq.s32.totalorder %s34, 1
      %p134 = scmp.ne.s32.totalorder %s129, %s131
      %p135 = scmp.eq.s32.totalorder %s34, 0
      %p136 = por %p134, %p135
      %p137 = scmp.ne.s32.totalorder %s129, %s131
      %p138 = scmp.eq.s32.totalorder %s39, 1
      %p139 = por %p137, %p138
      %p140 = scmp.ne.s32.totalorder %s131, %s132
      %p141 = scmp.eq.s32.totalorder %s39, 0
      %p142 = por %p140, %p141
      %p143 = scmp.ne.s32.totalorder %s131, %s132
      %p144 = scmp.eq.s32.totalorder %s40, 1
      %p145 = por %p143, %p144
      %p147 = scmp.ne.s32.totalorder %s132, %s146
      %p148 = scmp.eq.s32.totalorder %s40, 0
      %p149 = por %p147, %p148
      %s151 = sadd.s32 %s150, 1
      %p154 = scmp.eq.s32.totalorder %s34, 1
      %p155 = scmp.ne.s32.totalorder %s150, %s152
      %p156 = scmp.eq.s32.totalorder %s34, 0
      %p157 = por %p155, %p156
      %p158 = scmp.ne.s32.totalorder %s150, %s152
      %p159 = scmp.eq.s32.totalorder %s39, 1
      %p160 = por %p158, %p159
      %p161 = scmp.ne.s32.totalorder %s152, %s153
      %p162 = scmp.eq.s32.totalorder %s39, 0
      %p163 = por %p161, %p162
      %p164 = scmp.ne.s32.totalorder %s152, %s153
      %p165 = scmp.eq.s32.totalorder %s40, 1
      %p166 = por %p164, %p165
      %p168 = scmp.ne.s32.totalorder %s153, %s167
      %p169 = scmp.eq.s32.totalorder %s40, 0
      %p170 = por %p168, %p169
      %s172 = sadd.s32 %s171, 1
      %p175 = scmp.eq.s32.totalorder %s34, 1
      %p176 = scmp.ne.s32.totalorder %s171, %s173
      %p177 = scmp.eq.s32.totalorder %s34, 0
      %p178 = por %p176, %p177
      %p179 = scmp.ne.s32.totalorder %s171, %s173
      %p180 = scmp.eq.s32.totalorder %s39, 1
      %p181 = por %p179, %p180
      %p182 = scmp.ne.s32.totalorder %s173, %s174
      %p183 = scmp.eq.s32.totalorder %s39, 0
      %p184 = por %p182, %p183
      %p185 = scmp.ne.s32.totalorder %s173, %s174
      %p186 = scmp.eq.s32.totalorder %s40, 1
      %p187 = por %p185, %p186
      %p189 = scmp.ne.s32.totalorder %s174, %s188
      %p190 = scmp.eq.s32.totalorder %s40, 0
      %p191 = por %p189, %p190
      %s193 = sadd.s32 %s192, 1
      %p196 = scmp.eq.s32.totalorder %s34, 1
      %p197 = scmp.ne.s32.totalorder %s192, %s194
      %p198 = scmp.eq.s32.totalorder %s34, 0
      %p199 = por %p197, %p198
      %p200 = scmp.ne.s32.totalorder %s192, %s194
      %p201 = scmp.eq.s32.totalorder %s39, 1
      %p202 = por %p200, %p201
      %p203 = scmp.ne.s32.totalorder %s194, %s195
      %p204 = scmp.eq.s32.totalorder %s39, 0
      %p205 = por %p203, %p204
      %p206 = scmp.ne.s32.totalorder %s194, %s195
      %p207 = scmp.eq.s32.totalorder %s40, 1
      %p208 = por %p206, %p207
      %p210 = scmp.ne.s32.totalorder %s195, %s209
      %p211 = scmp.eq.s32.totalorder %s40, 0
      %p212 = por %p210, %p211
      %s214 = sadd.s32 %s213, 1
      %p217 = scmp.eq.s32.totalorder %s34, 1
      %p218 = scmp.ne.s32.totalorder %s213, %s215
      %p219 = scmp.eq.s32.totalorder %s34, 0
      %p220 = por %p218, %p219
      %p221 = scmp.ne.s32.totalorder %s213, %s215
      %p222 = scmp.eq.s32.totalorder %s39, 1
      %p223 = por %p221, %p222
      %p224 = scmp.ne.s32.totalorder %s215, %s216
      %p225 = scmp.eq.s32.totalorder %s39, 0
      %p226 = por %p224, %p225
      %p227 = scmp.ne.s32.totalorder %s215, %s216
      %p228 = scmp.eq.s32.totalorder %s40, 1
      %p229 = por %p227, %p228
      %p231 = scmp.ne.s32.totalorder %s216, %s230
      %p232 = scmp.eq.s32.totalorder %s40, 0
      %p233 = por %p231, %p232
      %s235 = sadd.s32 %s234, 1
      %p238 = scmp.eq.s32.totalorder %s34, 1
      %p239 = scmp.ne.s32.totalorder %s234, %s236
      %p240 = scmp.eq.s32.totalorder %s34, 0
      %p241 = por %p239, %p240
      %p242 = scmp.ne.s32.totalorder %s234, %s236
      %p243 = scmp.eq.s32.totalorder %s39, 1
      %p244 = por %p242, %p243
      %p245 = scmp.ne.s32.totalorder %s236, %s237
      %p246 = scmp.eq.s32.totalorder %s39, 0
      %p247 = por %p245, %p246
      %p248 = scmp.ne.s32.totalorder %s236, %s237
      %p249 = scmp.eq.s32.totalorder %s40, 1
      %p250 = por %p248, %p249
      %p252 = scmp.ne.s32.totalorder %s237, %s251
      %p253 = scmp.eq.s32.totalorder %s40, 0
      %p254 = por %p252, %p253
      %s256 = sadd.s32 %s255, 1
      %p259 = scmp.eq.s32.totalorder %s34, 1
      %p260 = scmp.ne.s32.totalorder %s255, %s257
      %p261 = scmp.eq.s32.totalorder %s34, 0
      %p262 = por %p260, %p261
      %p263 = scmp.ne.s32.totalorder %s255, %s257
      %p264 = scmp.eq.s32.totalorder %s39, 1
      %p265 = por %p263, %p264
      %p266 = scmp.ne.s32.totalorder %s257, %s258
      %p267 = scmp.eq.s32.totalorder %s39, 0
      %p268 = por %p266, %p267
      %p269 = scmp.ne.s32.totalorder %s257, %s258
      %p270 = scmp.eq.s32.totalorder %s40, 1
      %p271 = por %p269, %p270
      %p273 = scmp.ne.s32.totalorder %s258, %s272
      %p274 = scmp.eq.s32.totalorder %s40, 0
      %p275 = por %p273, %p274
      %s277 = sadd.s32 %s276, 1
      %p280 = scmp.eq.s32.totalorder %s34, 1
      %p281 = scmp.ne.s32.totalorder %s276, %s278
      %p282 = scmp.eq.s32.totalorder %s34, 0
      %p283 = por %p281, %p282
      %p284 = scmp.ne.s32.totalorder %s276, %s278
      %p285 = scmp.eq.s32.totalorder %s39, 1
      %p286 = por %p284, %p285
      %p287 = scmp.ne.s32.totalorder %s278, %s279
      %p288 = scmp.eq.s32.totalorder %s39, 0
      %p289 = por %p287, %p288
      %p290 = scmp.ne.s32.totalorder %s278, %s279
      %p291 = scmp.eq.s32.totalorder %s40, 1
      %p292 = por %p290, %p291
      %p294 = scmp.ne.s32.totalorder %s279, %s293
      %p295 = scmp.eq.s32.totalorder %s40, 0
      %p296 = por %p294, %p295
      %s298 = sadd.s32 %s297, 1
      %p301 = scmp.eq.s32.totalorder %s34, 1
      %p302 = scmp.ne.s32.totalorder %s297, %s299
      %p303 = scmp.eq.s32.totalorder %s34, 0
      %p304 = por %p302, %p303
      %p305 = scmp.ne.s32.totalorder %s297, %s299
      %p306 = scmp.eq.s32.totalorder %s39, 1
      %p307 = por %p305, %p306
      %p308 = scmp.ne.s32.totalorder %s299, %s300
      %p309 = scmp.eq.s32.totalorder %s39, 0
      %p310 = por %p308, %p309
      %p311 = scmp.ne.s32.totalorder %s299, %s300
      %p312 = scmp.eq.s32.totalorder %s40, 1
      %p313 = por %p311, %p312
      %p315 = scmp.ne.s32.totalorder %s300, %s314
      %p316 = scmp.eq.s32.totalorder %s40, 0
      %p317 = por %p315, %p316
      %s319 = sadd.s32 %s318, 1
      %p322 = scmp.eq.s32.totalorder %s34, 1
      %p323 = scmp.ne.s32.totalorder %s318, %s320
      %p324 = scmp.eq.s32.totalorder %s34, 0
      %p325 = por %p323, %p324
      %p326 = scmp.ne.s32.totalorder %s318, %s320
      %p327 = scmp.eq.s32.totalorder %s39, 1
      %p328 = por %p326, %p327
      %p329 = scmp.ne.s32.totalorder %s320, %s321
      %p330 = scmp.eq.s32.totalorder %s39, 0
      %p331 = por %p329, %p330
      %p332 = scmp.ne.s32.totalorder %s320, %s321
      %p333 = scmp.eq.s32.totalorder %s40, 1
      %p334 = por %p332, %p333
      %p336 = scmp.ne.s32.totalorder %s321, %s335
      %p337 = scmp.eq.s32.totalorder %s40, 0
      %p338 = por %p336, %p337
      %s340 = sadd.s32 %s339, 1
      %p343 = scmp.eq.s32.totalorder %s34, 1
      %p344 = scmp.ne.s32.totalorder %s339, %s341
      %p345 = scmp.eq.s32.totalorder %s34, 0
      %p346 = por %p344, %p345
      %p347 = scmp.ne.s32.totalorder %s339, %s341
      %p348 = scmp.eq.s32.totalorder %s39, 1
      %p349 = por %p347, %p348
      %p350 = scmp.ne.s32.totalorder %s341, %s342
      %p351 = scmp.eq.s32.totalorder %s39, 0
      %p352 = por %p350, %p351
      %p353 = scmp.ne.s32.totalorder %s341, %s342
      %p354 = scmp.eq.s32.totalorder %s40, 1
      %p355 = por %p353, %p354
      %p357 = scmp.ne.s32.totalorder %s342, %s356
      %p358 = scmp.eq.s32.totalorder %s40, 0
      %p359 = por %p357, %p358
      %s361 = sadd.s32 %s360, 1
      %p364 = scmp.eq.s32.totalorder %s34, 1
      %p365 = scmp.ne.s32.totalorder %s360, %s362
      %p366 = scmp.eq.s32.totalorder %s34, 0
      %p367 = por %p365, %p366
      %p368 = scmp.ne.s32.totalorder %s360, %s362
      %p369 = scmp.eq.s32.totalorder %s39, 1
      %p370 = por %p368, %p369
      %p371 = scmp.ne.s32.totalorder %s362, %s363
      %p372 = scmp.eq.s32.totalorder %s39, 0
      %p373 = por %p371, %p372
      %p374 = scmp.ne.s32.totalorder %s362, %s363
      %p375 = scmp.eq.s32.totalorder %s40, 1
      %p376 = por %p374, %p375
      %p378 = scmp.ne.s32.totalorder %s363, %s377
      %p379 = scmp.eq.s32.totalorder %s40, 0
      %p380 = por %p378, %p379
      %s382 = sadd.s32 %s381, 1
      %p385 = scmp.eq.s32.totalorder %s34, 1
      %p386 = scmp.ne.s32.totalorder %s381, %s383
      %p387 = scmp.eq.s32.totalorder %s34, 0
      %p388 = por %p386, %p387
      %p389 = scmp.ne.s32.totalorder %s381, %s383
      %p390 = scmp.eq.s32.totalorder %s39, 1
      %p391 = por %p389, %p390
      %p392 = scmp.ne.s32.totalorder %s383, %s384
      %p393 = scmp.eq.s32.totalorder %s39, 0
      %p394 = por %p392, %p393
      %p395 = scmp.ne.s32.totalorder %s383, %s384
      %p396 = scmp.eq.s32.totalorder %s40, 1
      %p397 = por %p395, %p396
      %p399 = scmp.ne.s32.totalorder %s384, %s398
      %p400 = scmp.eq.s32.totalorder %s40, 0
      %p401 = por %p399, %p400
      %s402 = ssub.s32 %s41, %s53
      %s403 = ssub.s32 %s42, %s49
      %s404 = sor.u32 %s402, %s403
      %p405 = scmp.eq.s32.totalorder %s404, 0
      %s407 = sadd.s32 %s406, 1
      %s408 = scalar_select %p405, %s406, %s407
      %p411 = pneg %p405
      %p412 = scmp.eq.s32.totalorder %s34, 1
      %p413 = por %p411, %p412
      %p414 = scmp.ne.s32.totalorder %s406, %s409
      %p415 = scmp.eq.s32.totalorder %s34, 0
      %p416 = por %p414, %p415
      %p417 = scmp.ne.s32.totalorder %s406, %s409
      %p418 = scmp.eq.s32.totalorder %s39, 1
      %p419 = por %p417, %p418
      %p420 = scmp.ne.s32.totalorder %s409, %s410
      %p421 = scmp.eq.s32.totalorder %s39, 0
      %p422 = por %p420, %p421
      %p423 = scmp.ne.s32.totalorder %s409, %s410
      %p424 = scmp.eq.s32.totalorder %s40, 1
      %p425 = por %p423, %p424
      %p427 = scmp.ne.s32.totalorder %s410, %s426
      %p428 = scmp.eq.s32.totalorder %s40, 0
      %p429 = por %p427, %p428
      %s430 = ssub.s32 %s41, %s53
      %s431 = ssub.s32 %s42, %s49
      %s432 = sor.u32 %s430, %s431
      %p433 = scmp.eq.s32.totalorder %s432, 0
      %s435 = sadd.s32 %s434, 1
      %s436 = scalar_select %p433, %s434, %s435
      %p439 = pneg %p433
      %p440 = scmp.eq.s32.totalorder %s34, 1
      %p441 = por %p439, %p440
      %p442 = scmp.ne.s32.totalorder %s434, %s437
      %p443 = scmp.eq.s32.totalorder %s34, 0
      %p444 = por %p442, %p443
      %p445 = scmp.ne.s32.totalorder %s434, %s437
      %p446 = scmp.eq.s32.totalorder %s39, 1
      %p447 = por %p445, %p446
      %p448 = scmp.ne.s32.totalorder %s437, %s438
      %p449 = scmp.eq.s32.totalorder %s39, 0
      %p450 = por %p448, %p449
      %p451 = scmp.ne.s32.totalorder %s437, %s438
      %p452 = scmp.eq.s32.totalorder %s40, 1
      %p453 = por %p451, %p452
      %p455 = scmp.ne.s32.totalorder %s438, %s454
      %p456 = scmp.eq.s32.totalorder %s40, 0
      %p457 = por %p455, %p456
      %p458 = scmp.le.s32.totalorder 1, %s34
      %p459 = scmp.lt.s32.totalorder %s34, 3
      %p460 = pnand %p458, %p459
      %p461 = pneg %p460
      // Predicated region
      $region9: #{tpu_custom_call.1} parent=5 // pred_check
        _
      $region10: #{tpu_custom_call.1} parent=5 // pred_check_branch
        %463 = sbr.rel (%p460) target = $region12
      $region11: #{tpu_custom_call.1} parent=5 // pred_region
        %s464 = ssub.s32 %s34, 1
        // Predicated region
        $region13: #{tpu_custom_call.1} parent=11 // pred_check
          %p465 = pneg %p121
        $region14: #{tpu_custom_call.1} parent=11 // pred_check_branch
          %467 = sbr.rel (%p465) target = $region16
        $region15: #{tpu_custom_call.1} parent=11 // pred_region
          _
        $region16: #{tpu_custom_call.1} parent=11 // pred_fallthru
          _
        // Predicated region
        $region17: #{tpu_custom_call.1} parent=11 // pred_check
          %p468 = pneg %p142
        $region18: #{tpu_custom_call.1} parent=11 // pred_check_branch
          %470 = sbr.rel (%p468) target = $region20
        $region19: #{tpu_custom_call.1} parent=11 // pred_region
          _
        $region20: #{tpu_custom_call.1} parent=11 // pred_fallthru
          _
        // Predicated region
        $region21: #{tpu_custom_call.1} parent=11 // pred_check
          %p471 = pneg %p163
        $region22: #{tpu_custom_call.1} parent=11 // pred_check_branch
          %473 = sbr.rel (%p471) target = $region24
        $region23: #{tpu_custom_call.1} parent=11 // pred_region
          _
        $region24: #{tpu_custom_call.1} parent=11 // pred_fallthru
          _
        // Predicated region
        $region25: #{tpu_custom_call.1} parent=11 // pred_check
          %p474 = pneg %p184
        $region26: #{tpu_custom_call.1} parent=11 // pred_check_branch
          %476 = sbr.rel (%p474) target = $region28
        $region27: #{tpu_custom_call.1} parent=11 // pred_region
          _
        $region28: #{tpu_custom_call.1} parent=11 // pred_fallthru
          _
        // Predicated region
        $region29: #{tpu_custom_call.1} parent=11 // pred_check
          %p477 = pneg %p205
        $region30: #{tpu_custom_call.1} parent=11 // pred_check_branch
          %479 = sbr.rel (%p477) target = $region32
        $region31: #{tpu_custom_call.1} parent=11 // pred_region
          _
        $region32: #{tpu_custom_call.1} parent=11 // pred_fallthru
          _
        // Predicated region
        $region33: #{tpu_custom_call.1} parent=11 // pred_check
          %p480 = pneg %p226
        $region34: #{tpu_custom_call.1} parent=11 // pred_check_branch
          %482 = sbr.rel (%p480) target = $region36
        $region35: #{tpu_custom_call.1} parent=11 // pred_region
          _
        $region36: #{tpu_custom_call.1} parent=11 // pred_fallthru
          _
        // Predicated region
        $region37: #{tpu_custom_call.1} parent=11 // pred_check
          %p483 = pneg %p247
        $region38: #{tpu_custom_call.1} parent=11 // pred_check_branch
          %485 = sbr.rel (%p483) target = $region40
        $region39: #{tpu_custom_call.1} parent=11 // pred_region
          _
        $region40: #{tpu_custom_call.1} parent=11 // pred_fallthru
          _
        // Predicated region
        $region41: #{tpu_custom_call.1} parent=11 // pred_check
          %p486 = pneg %p268
        $region42: #{tpu_custom_call.1} parent=11 // pred_check_branch
          %488 = sbr.rel (%p486) target = $region44
        $region43: #{tpu_custom_call.1} parent=11 // pred_region
          _
        $region44: #{tpu_custom_call.1} parent=11 // pred_fallthru
          _
        // Predicated region
        $region45: #{tpu_custom_call.1} parent=11 // pred_check
          %p489 = pneg %p289
        $region46: #{tpu_custom_call.1} parent=11 // pred_check_branch
          %491 = sbr.rel (%p489) target = $region48
        $region47: #{tpu_custom_call.1} parent=11 // pred_region
          %493 = vsyncadd [#allocation8], 0
          %s494 = sshll.u32 %s10, 4
          %s495 = int_to_ptr.hbm [resolvable:$true] %s494
          %s496 = sshll.u32 [#allocation7], 4
          %s497 = int_to_ptr.vmem [resolvable:$true] %s496
          %502 = dma.hbm_to_vmem [thread:$0]  %s495, 256, %s497, [#allocation8], 64, 64, 4
        $region48: #{tpu_custom_call.1} parent=11 // pred_fallthru
          _
        // Predicated region
        $region49: #{tpu_custom_call.1} parent=11 // pred_check
          %p503 = pneg %p310
        $region50: #{tpu_custom_call.1} parent=11 // pred_check_branch
          %505 = sbr.rel (%p503) target = $region52
        $region51: #{tpu_custom_call.1} parent=11 // pred_region
          _
        $region52: #{tpu_custom_call.1} parent=11 // pred_fallthru
          _
        // Predicated region
        $region53: #{tpu_custom_call.1} parent=11 // pred_check
          %p506 = pneg %p331
        $region54: #{tpu_custom_call.1} parent=11 // pred_check_branch
          %508 = sbr.rel (%p506) target = $region56
        $region55: #{tpu_custom_call.1} parent=11 // pred_region
          %510 = vsyncadd [#allocation8], 0
          %s511 = sshll.u32 %s12, 4
          %s512 = int_to_ptr.hbm [resolvable:$true] %s511
          %s513 = sshll.u32 [#allocation9], 4
          %s514 = int_to_ptr.vmem [resolvable:$true] %s513
          %519 = dma.hbm_to_vmem [thread:$0]  %s512, 256, %s514, [#allocation8], 64, 64, 4
        $region56: #{tpu_custom_call.1} parent=11 // pred_fallthru
          _
        // Predicated region
        $region57: #{tpu_custom_call.1} parent=11 // pred_check
          %p520 = pneg %p352
        $region58: #{tpu_custom_call.1} parent=11 // pred_check_branch
          %522 = sbr.rel (%p520) target = $region60
        $region59: #{tpu_custom_call.1} parent=11 // pred_region
          _
        $region60: #{tpu_custom_call.1} parent=11 // pred_fallthru
          _
        // Predicated region
        $region61: #{tpu_custom_call.1} parent=11 // pred_check
          %p523 = pneg %p373
        $region62: #{tpu_custom_call.1} parent=11 // pred_check_branch
          %525 = sbr.rel (%p523) target = $region64
        $region63: #{tpu_custom_call.1} parent=11 // pred_region
          _
        $region64: #{tpu_custom_call.1} parent=11 // pred_fallthru
          _
        // Predicated region
        $region65: #{tpu_custom_call.1} parent=11 // pred_check
          %p526 = pneg %p394
        $region66: #{tpu_custom_call.1} parent=11 // pred_check_branch
          %528 = sbr.rel (%p526) target = $region68
        $region67: #{tpu_custom_call.1} parent=11 // pred_region
          _
        $region68: #{tpu_custom_call.1} parent=11 // pred_fallthru
          _
      $region12: #{tpu_custom_call.1} parent=5 // pred_fallthru
        _
      %p529 = scmp.lt.s32.totalorder %s34, 2
      // Predicated region
      $region69: #{tpu_custom_call.1} parent=5 // pred_check
        %p530 = pneg %p529
      $region70: #{tpu_custom_call.1} parent=5 // pred_check_branch
        %532 = sbr.rel (%p530) target = $region72
      $region71: #{tpu_custom_call.1} parent=5 // pred_region
        // Predicated region
        $region73: #{tpu_custom_call.1} parent=71 // pred_check
          %p533 = pneg %p66
        $region74: #{tpu_custom_call.1} parent=71 // pred_check_branch
          %535 = sbr.rel (%p533) target = $region76
        $region75: #{tpu_custom_call.1} parent=71 // pred_region
          %p536 = scmp.lt.s32.totalorder %s41, 1
          %s537 = scalar_select %p536, %s41, 1
          %s538 = smul.addr %s537, 8
          %s539 = scalar_lea.vmem %s0, %s538
        $region76: #{tpu_custom_call.1} parent=71 // pred_fallthru
          _
        // Predicated region
        $region77: #{tpu_custom_call.1} parent=71 // pred_check
          %p540 = pneg %p94
        $region78: #{tpu_custom_call.1} parent=71 // pred_check_branch
          %542 = sbr.rel (%p540) target = $region80
        $region79: #{tpu_custom_call.1} parent=71 // pred_region
          %s543 = sand.u32 %s84, 1
          %s544 = scalar_lea.sflag [#allocation5], %s543
          %s545 = sand.u32 %s84, 1
          %s546 = smul.addr %s545, 4
          %s547 = scalar_lea.vmem [#allocation4], %s546
          %549 = vsyncadd %s544, 0
          %s550 = sadd.s32 %s42, %s41
          %s551 = smul.addr %s550, 4
          %s552 = scalar_lea.hbm %s1, %s551
          %s554 = sshll.u32 %s552, 4
          %s555 = int_to_ptr.hbm [resolvable:$true] %s554
          %s556 = sshll.u32 %s547, 4
          %s557 = int_to_ptr.vmem [resolvable:$true] %s556
          %559 = dma.hbm_to_vmem [thread:$0]  %s555, 64, %s557, %s544
        $region80: #{tpu_custom_call.1} parent=71 // pred_fallthru
          _
      $region72: #{tpu_custom_call.1} parent=5 // pred_fallthru
        _
      %p560 = scmp.le.s32.totalorder 1, %s34
      %p561 = scmp.lt.s32.totalorder %s34, 3
      %p562 = pnand %p560, %p561
      %p563 = pneg %p562
      // Predicated region
      $region81: #{tpu_custom_call.1} parent=5 // pred_check
        _
      $region82: #{tpu_custom_call.1} parent=5 // pred_check_branch
        %565 = sbr.rel (%p562) target = $region84
      $region83: #{tpu_custom_call.1} parent=5 // pred_region
        %s566 = ssub.s32 %s34, 1
        %s567 = sand.u32 %s87, 1
        %s568 = scalar_lea.sflag [#allocation5], %s567
        %s569 = sand.u32 %s87, 1
        %s570 = smul.addr %s569, 4
        %s571 = scalar_lea.vmem [#allocation4], %s570
        // Predicated region
        $region85: #{tpu_custom_call.1} parent=83 // pred_check
          %p572 = pneg %p100
        $region86: #{tpu_custom_call.1} parent=83 // pred_check_branch
          %574 = sbr.rel (%p572) target = $region88
        $region87: #{tpu_custom_call.1} parent=83 // pred_region
          %576 = dma.done %s568, 64
        $region88: #{tpu_custom_call.1} parent=83 // pred_fallthru
          _
        // Predicated region
        $region89: #{tpu_custom_call.1} parent=83 // pred_check
          %p577 = pneg %p289
        $region90: #{tpu_custom_call.1} parent=83 // pred_check_branch
          %579 = sbr.rel (%p577) target = $region92
        $region91: #{tpu_custom_call.1} parent=83 // pred_region
          %581 = dma.done [#allocation8], 256
        $region92: #{tpu_custom_call.1} parent=83 // pred_fallthru
          _
        // Predicated region
        $region93: #{tpu_custom_call.1} parent=83 // pred_check
          %p582 = pneg %p331
        $region94: #{tpu_custom_call.1} parent=83 // pred_check_branch
          %584 = sbr.rel (%p582) target = $region96
        $region95: #{tpu_custom_call.1} parent=83 // pred_region
          %586 = dma.done [#allocation8], 256
        $region96: #{tpu_custom_call.1} parent=83 // pred_fallthru
          _
        %p587 = scmp.lt.s32.totalorder %s43, 1
        %s588 = scalar_select %p587, %s43, 1
        %s589 = smul.addr %s588, 8
        %s590 = scalar_lea.vmem %s0, %s589
        %p591 = pneg %p72
        %p592 = pneg %p69
        %s593 = sand.u32 %s87, 1
        %s594 = scalar_lea.sflag [#allocation5], %s593
        %s595 = sand.u32 %s87, 1
        %s596 = smul.addr %s595, 4
        %s597 = scalar_lea.vmem [#allocation4], %s596
        %p598 = pneg %p100
        %p599 = pneg %p97
        %p600 = pneg %p121
        %p601 = pneg %p118
        %p602 = pneg %p142
        %p603 = pneg %p139
        %p604 = pneg %p163
        %p605 = pneg %p160
        %p606 = pneg %p184
        %p607 = pneg %p181
        %p608 = pneg %p205
        %p609 = pneg %p202
        %p610 = pneg %p226
        %p611 = pneg %p223
        %p612 = pneg %p247
        %p613 = pneg %p244
        %p614 = pneg %p268
        %p615 = pneg %p265
        %p616 = pneg %p289
        %p617 = pneg %p286
        %p618 = pneg %p310
        %p619 = pneg %p307
        %p620 = pneg %p331
        %p621 = pneg %p328
        %p622 = pneg %p352
        %p623 = pneg %p349
        %p624 = pneg %p373
        %p625 = pneg %p370
        %p626 = pneg %p394
        %p627 = pneg %p391
        %p628 = pneg %p422
        %p629 = pneg %p419
        %s630 = sand.u32 %s409, 1
        %s631 = scalar_lea.sflag [#allocation6], %s630
        %s632 = sand.u32 %s409, 1
        %s633 = smul.addr %s632, 8
        %s634 = scalar_lea.vmem [#allocation10], %s633
        %p635 = pneg %p450
        %p636 = pneg %p447
        %s637 = sand.u32 %s437, 1
        %s638 = scalar_lea.sflag [#allocation12], %s637
        %s639 = sand.u32 %s437, 1
        %s640 = smul.addr %s639, 32
        %s641 = scalar_lea.vmem [#allocation11], %s640
        %p642 = scmp.lt.s32.totalorder %s43, 1
        %s643 = scalar_select %p642, %s43, 1
        %s644 = smul.addr %s643, 8
        %s645 = scalar_lea.vmem %s0, %s644
        %v647 = vld [vmem:[%s2] sm:$0x1]
        %v648 = vld [vmem:[%s3] sm:$0x1]
        %v649 = vld [vmem:[%s4] sm:$0x1]
        %v650 = vld [vmem:[%s5] sm:$0x1]
        %p651 = scmp.eq.s32.totalorder %s44, 0
        // Predicated region
        $region97: #{tpu_custom_call.1} parent=83 // pred_check
          %p652 = pneg %p651
        $region98: #{tpu_custom_call.1} parent=83 // pred_check_branch
          %654 = sbr.rel (%p652) target = $region100
        $region99: #{tpu_custom_call.1} parent=83 // pred_region
          %v655 = vld [vmem:[%s645] sm:$0xff]
          %v656 = vpack.c.bf16 %v655, %v655
          %v657 = vld [vmem:[%s8] sm:$0xf]
          %v658 = vld [vmem:[%s8 + $0x4] sm:$0xf]
          %v659 = vld [vmem:[%s8 + $0x8] sm:$0xf]
          %v660 = vld [vmem:[%s8 + $0xc] sm:$0xf]
          %v661 = vld [vmem:[%s9] sm:$0x1]
          %v663 = vperm.slane %v661, 0
          %v669 = vunpack.c.l.b16 %v657
          %v670 = vunpack.c.l.b16 %v658
          %v671 = vunpack.c.l.b16 %v659
          %v672 = vunpack.c.l.b16 %v660
          %v673 = vpack.c.b16 %v670, %v669
          %v674 = vpack.c.b16 %v672, %v671
          %vm677 = vcmask 261120
          %v679 = vsel %vm677, %v656, 0
          %681 = vmatpush.bf16.msra.mxu0 0
          %682 = vmatpush.bf16.msra.mxu0 0
          %683 = vmatpush.bf16.msra.mxu0 0
          %684 = vmatpush.bf16.msra.mxu0 0
          %685 = vmatpush.bf16.msra.mxu0 0
          %686 = vmatpush.bf16.msra.mxu0 0
          %687 = vmatpush.bf16.msra.mxu0 %v674
          %688 = vmatpush.bf16.msra.mxu0 %v673
          %689 = vmatmul.bf16.gmra.mxu0 %v679
          %v690 = vpop.f32.mrf.mxu0
          %v691 = vadd.f32 %v663, %v690
          %v692 = vpop.f32.mrf.mxu0
          %693 = vdwg.mxu0
          %695 = vrot.lane.b32.xlu0 %v691, 120
          %v696 = vpop.permute.xlu0 %695
          %698 = vrot.lane.b32.xlu0 %v691, 112
          %v699 = vpop.permute.xlu0 %698
          %701 = vrot.lane.b32.xlu0 %v691, 104
          %v702 = vpop.permute.xlu0 %701
          %v704 = vrot.slane %v699, 4
          %vm705 = vcmask 1047556
          %v706 = vsel %vm705, %v704, %v691
          %v707 = vrot.slane %v691, 4
          %v708 = vsel %vm705, %v699, %v707
          %v710 = vunpack.c.l.s4 1983009808
          %v711 = vunpack.c.0.s8 %v710
          %v712 = vperm.slane %v706, %v711
          %v714 = vunpack.c.l.s4 1983009808
          %v715 = vunpack.c.0.s8 %v714
          %v716 = vperm.slane %v708, %v715
          %v717 = vrot.slane %v702, 4
          %v718 = vsel %vm705, %v717, %v696
          %v719 = vrot.slane %v696, 4
          %v720 = vsel %vm705, %v702, %v719
          %v722 = vunpack.c.l.s4 1983009808
          %v723 = vunpack.c.0.s8 %v722
          %v724 = vperm.slane %v718, %v723
          %v726 = vunpack.c.l.s4 1983009808
          %v727 = vunpack.c.0.s8 %v726
          %v728 = vperm.slane %v720, %v727
          %v729 = vrot.slane %v724, 4
          %v730 = vsel %vm705, %v729, %v712
          %v731 = vrot.slane %v712, 4
          %v732 = vsel %vm705, %v724, %v731
          %v734 = vunpack.c.l.s4 1934713408
          %v735 = vunpack.c.0.s8 %v734
          %v736 = vperm.slane %v730, %v735
          %v738 = vunpack.c.l.s4 1934713408
          %v739 = vunpack.c.0.s8 %v738
          %v740 = vperm.slane %v732, %v739
          %v741 = vrot.slane %v728, 4
          %v742 = vsel %vm705, %v741, %v716
          %v743 = vrot.slane %v716, 4
          %v744 = vsel %vm705, %v728, %v743
          %v746 = vunpack.c.l.s4 1934713408
          %v747 = vunpack.c.0.s8 %v746
          %v748 = vperm.slane %v742, %v747
          %v750 = vunpack.c.l.s4 1934713408
          %v751 = vunpack.c.0.s8 %v750
          %v752 = vperm.slane %v744, %v751
          %v753 = vrot.slane %v736, 4
          %v754 = vsel %vm705, 0.0, %v753
          %v755 = vrot.slane %v740, 4
          %v756 = vsel %vm705, 0.0, %v755
          %v757 = vrot.slane %v748, 4
          %v758 = vsel %vm705, 0.0, %v757
          %v759 = vrot.slane %v752, 4
          %v760 = vsel %vm705, 0.0, %v759
          %v761 = vsel %vm705, %v755, %v736
          %v763 = vunpack.c.l.s4 1983009808
          %v764 = vunpack.c.0.s8 %v763
          %v765 = vperm.slane %v761, %v764
          %v766 = vrot.slane %v756, 4
          %v767 = vsel %vm705, %v766, %v754
          %v769 = vunpack.c.l.s4 1983009808
          %v770 = vunpack.c.0.s8 %v769
          %v771 = vperm.slane %v767, %v770
          %v772 = vsel %vm705, %v759, %v748
          %v774 = vunpack.c.l.s4 1983009808
          %v775 = vunpack.c.0.s8 %v774
          %v776 = vperm.slane %v772, %v775
          %v777 = vrot.slane %v760, 4
          %v778 = vsel %vm705, %v777, %v758
          %v780 = vunpack.c.l.s4 1983009808
          %v781 = vunpack.c.0.s8 %v780
          %v782 = vperm.slane %v778, %v781
          %v783 = vrot.slane %v771, 4
          %v784 = vsel %vm705, %v783, %v765
          %v785 = vrot.slane %v765, 4
          %v786 = vsel %vm705, %v771, %v785
          %v788 = vunpack.c.l.s4 1934713408
          %v789 = vunpack.c.0.s8 %v788
          %v790 = vperm.slane %v784, %v789
          %v792 = vunpack.c.l.s4 1934713408
          %v793 = vunpack.c.0.s8 %v792
          %v794 = vperm.slane %v786, %v793
          %v795 = vrot.slane %v782, 4
          %v796 = vsel %vm705, %v795, %v776
          %v797 = vrot.slane %v776, 4
          %v798 = vsel %vm705, %v782, %v797
          %v800 = vunpack.c.l.s4 1934713408
          %v801 = vunpack.c.0.s8 %v800
          %v802 = vperm.slane %v796, %v801
          %v804 = vunpack.c.l.s4 1934713408
          %v805 = vunpack.c.0.s8 %v804
          %v806 = vperm.slane %v798, %v805
          %v807 = vrot.slane %v802, 4
          %v808 = vsel %vm705, %v807, %v790
          %v809 = vrot.slane %v790, 4
          %v810 = vsel %vm705, %v802, %v809
          %v811 = vrot.slane %v806, 4
          %v812 = vsel %vm705, %v811, %v794
          %v813 = vrot.slane %v794, 4
          %v814 = vsel %vm705, %v806, %v813
          %v815 = vpack.c.bf16 %v808, %v808
          %v816 = vpack.c.bf16 %v810, %v810
          %v817 = vpack.c.bf16 %v812, %v812
          %v818 = vpack.c.bf16 %v814, %v814
          %vm819 = vcmask 60416
          %820 = vst.msk [vmem:[#allocation2] sm:$0xf] %vm819, %v815
          %821 = vst.msk [vmem:[#allocation2 + $0x4] sm:$0xf] %vm819, %v816
          %822 = vst.msk [vmem:[#allocation2 + $0x8] sm:$0xf] %vm819, %v817
          %823 = vst.msk [vmem:[#allocation2 + $0xc] sm:$0xf] %vm819, %v818
          %824 = vrot.lane.b32.xlu0 %v691, 96
          %v825 = vpop.permute.xlu0 %824
          %826 = vrot.lane.b32.xlu0 %v696, 96
          %v827 = vpop.permute.xlu0 %826
          %828 = vrot.lane.b32.xlu0 %v699, 96
          %v829 = vpop.permute.xlu0 %828
          %830 = vrot.lane.b32.xlu0 %v702, 96
          %v831 = vpop.permute.xlu0 %830
          %v836 = vrot.slane %v829, 4
          %v837 = vsel %vm705, %v836, %v825
          %v838 = vrot.slane %v825, 4
          %v839 = vsel %vm705, %v829, %v838
          %v841 = vunpack.c.l.s4 1983009808
          %v842 = vunpack.c.0.s8 %v841
          %v843 = vperm.slane %v837, %v842
          %v845 = vunpack.c.l.s4 1983009808
          %v846 = vunpack.c.0.s8 %v845
          %v847 = vperm.slane %v839, %v846
          %v848 = vrot.slane %v831, 4
          %v849 = vsel %vm705, %v848, %v827
          %v850 = vrot.slane %v827, 4
          %v851 = vsel %vm705, %v831, %v850
          %v853 = vunpack.c.l.s4 1983009808
          %v854 = vunpack.c.0.s8 %v853
          %v855 = vperm.slane %v849, %v854
          %v857 = vunpack.c.l.s4 1983009808
          %v858 = vunpack.c.0.s8 %v857
          %v859 = vperm.slane %v851, %v858
          %v860 = vrot.slane %v855, 4
          %v861 = vsel %vm705, %v860, %v843
          %v862 = vrot.slane %v843, 4
          %v863 = vsel %vm705, %v855, %v862
          %v865 = vunpack.c.l.s4 1934713408
          %v866 = vunpack.c.0.s8 %v865
          %v867 = vperm.slane %v861, %v866
          %v869 = vunpack.c.l.s4 1934713408
          %v870 = vunpack.c.0.s8 %v869
          %v871 = vperm.slane %v863, %v870
          %v872 = vrot.slane %v859, 4
          %v873 = vsel %vm705, %v872, %v847
          %v874 = vrot.slane %v847, 4
          %v875 = vsel %vm705, %v859, %v874
          %v877 = vunpack.c.l.s4 1934713408
          %v878 = vunpack.c.0.s8 %v877
          %v879 = vperm.slane %v873, %v878
          %v881 = vunpack.c.l.s4 1934713408
          %v882 = vunpack.c.0.s8 %v881
          %v883 = vperm.slane %v875, %v882
          %v884 = vrot.slane %v867, 4
          %v885 = vsel %vm705, 0.0, %v884
          %v886 = vrot.slane %v871, 4
          %v887 = vsel %vm705, 0.0, %v886
          %v888 = vrot.slane %v879, 4
          %v889 = vsel %vm705, 0.0, %v888
          %v890 = vrot.slane %v883, 4
          %v891 = vsel %vm705, 0.0, %v890
          %v892 = vsel %vm705, %v886, %v867
          %v894 = vunpack.c.l.s4 1983009808
          %v895 = vunpack.c.0.s8 %v894
          %v896 = vperm.slane %v892, %v895
          %v897 = vrot.slane %v887, 4
          %v898 = vsel %vm705, %v897, %v885
          %v900 = vunpack.c.l.s4 1983009808
          %v901 = vunpack.c.0.s8 %v900
          %v902 = vperm.slane %v898, %v901
          %v903 = vsel %vm705, %v890, %v879
          %v905 = vunpack.c.l.s4 1983009808
          %v906 = vunpack.c.0.s8 %v905
          %v907 = vperm.slane %v903, %v906
          %v908 = vrot.slane %v891, 4
          %v909 = vsel %vm705, %v908, %v889
          %v911 = vunpack.c.l.s4 1983009808
          %v912 = vunpack.c.0.s8 %v911
          %v913 = vperm.slane %v909, %v912
          %v914 = vrot.slane %v902, 4
          %v915 = vsel %vm705, %v914, %v896
          %v916 = vrot.slane %v896, 4
          %v917 = vsel %vm705, %v902, %v916
          %v919 = vunpack.c.l.s4 1934713408
          %v920 = vunpack.c.0.s8 %v919
          %v921 = vperm.slane %v915, %v920
          %v923 = vunpack.c.l.s4 1934713408
          %v924 = vunpack.c.0.s8 %v923
          %v925 = vperm.slane %v917, %v924
          %v926 = vrot.slane %v913, 4
          %v927 = vsel %vm705, %v926, %v907
          %v928 = vrot.slane %v907, 4
          %v929 = vsel %vm705, %v913, %v928
          %v931 = vunpack.c.l.s4 1934713408
          %v932 = vunpack.c.0.s8 %v931
          %v933 = vperm.slane %v927, %v932
          %v935 = vunpack.c.l.s4 1934713408
          %v936 = vunpack.c.0.s8 %v935
          %v937 = vperm.slane %v929, %v936
          %v938 = vrot.slane %v933, 4
          %v939 = vsel %vm705, %v938, %v921
          %v940 = vrot.slane %v921, 4
          %v941 = vsel %vm705, %v933, %v940
          %v942 = vrot.slane %v937, 4
          %v943 = vsel %vm705, %v942, %v925
          %v944 = vrot.slane %v925, 4
          %v945 = vsel %vm705, %v937, %v944
          %v946 = vpack.c.bf16 %v939, %v939
          %v947 = vpack.c.bf16 %v941, %v941
          %v948 = vpack.c.bf16 %v943, %v943
          %v949 = vpack.c.bf16 %v945, %v945
          %950 = vst.msk [vmem:[#allocation3] sm:$0xf] %vm819, %v946
          %951 = vst.msk [vmem:[#allocation3 + $0x4] sm:$0xf] %vm819, %v947
          %952 = vst.msk [vmem:[#allocation3 + $0x8] sm:$0xf] %vm819, %v948
          %953 = vst.msk [vmem:[#allocation3 + $0xc] sm:$0xf] %vm819, %v949
        $region100: #{tpu_custom_call.1} parent=83 // pred_fallthru
          _
        %s954 = smul.u32 %s44, 8
        %s955 = scalar_lea.vmem %s645, %s954
        %v956 = vld [vmem:[%s955] sm:$0xff]
        %v957 = vpack.c.bf16 %v956, %v956
        %v958 = vld [vmem:[%s6] sm:$0xf]
        %v959 = vld [vmem:[%s6 + $0x4] sm:$0xf]
        %v960 = vld [vmem:[%s6 + $0x8] sm:$0xf]
        %v961 = vld [vmem:[%s6 + $0xc] sm:$0xf]
        %v962 = vld [vmem:[%s7] sm:$0x1]
        %v964 = vperm.slane %v962, 0
        %v970 = vunpack.c.l.b16 %v958
        %v971 = vunpack.c.l.b16 %v959
        %v972 = vunpack.c.l.b16 %v960
        %v973 = vunpack.c.l.b16 %v961
        %v974 = vpack.c.b16 %v971, %v970
        %v975 = vpack.c.b16 %v973, %v972
        %vm978 = vcmask 261120
        %v980 = vsel %vm978, %v957, 0
        %982 = vmatpush.bf16.msra.mxu0 0
        %983 = vmatpush.bf16.msra.mxu0 0
        %984 = vmatpush.bf16.msra.mxu0 0
        %985 = vmatpush.bf16.msra.mxu0 0
        %986 = vmatpush.bf16.msra.mxu0 0
        %987 = vmatpush.bf16.msra.mxu0 0
        %988 = vmatpush.bf16.msra.mxu0 %v975
        %989 = vmatpush.bf16.msra.mxu0 %v974
        %990 = vmatmul.bf16.gmra.mxu0 %v980
        %v991 = vpop.f32.mrf.mxu0
        %v992 = vadd.f32 %v964, %v991
        %v993 = vpop.f32.mrf.mxu0
        %994 = vdwg.mxu0
        %v995 = vmul.f32 %v992, 0.35355338
        %997 = vrot.lane.b32.xlu0 %v995, 120
        %v998 = vpop.permute.xlu0 %997
        %1000 = vrot.lane.b32.xlu0 %v995, 112
        %v1001 = vpop.permute.xlu0 %1000
        %1003 = vrot.lane.b32.xlu0 %v995, 104
        %v1004 = vpop.permute.xlu0 %1003
        %v1006 = vrot.slane %v1001, 4
        %vm1007 = vcmask 1047556
        %v1008 = vsel %vm1007, %v1006, %v995
        %v1009 = vrot.slane %v995, 4
        %v1010 = vsel %vm1007, %v1001, %v1009
        %v1012 = vunpack.c.l.s4 1983009808
        %v1013 = vunpack.c.0.s8 %v1012
        %v1014 = vperm.slane %v1008, %v1013
        %v1016 = vunpack.c.l.s4 1983009808
        %v1017 = vunpack.c.0.s8 %v1016
        %v1018 = vperm.slane %v1010, %v1017
        %v1019 = vrot.slane %v1004, 4
        %v1020 = vsel %vm1007, %v1019, %v998
        %v1021 = vrot.slane %v998, 4
        %v1022 = vsel %vm1007, %v1004, %v1021
        %v1024 = vunpack.c.l.s4 1983009808
        %v1025 = vunpack.c.0.s8 %v1024
        %v1026 = vperm.slane %v1020, %v1025
        %v1028 = vunpack.c.l.s4 1983009808
        %v1029 = vunpack.c.0.s8 %v1028
        %v1030 = vperm.slane %v1022, %v1029
        %v1031 = vrot.slane %v1026, 4
        %v1032 = vsel %vm1007, %v1031, %v1014
        %v1033 = vrot.slane %v1014, 4
        %v1034 = vsel %vm1007, %v1026, %v1033
        %v1036 = vunpack.c.l.s4 1934713408
        %v1037 = vunpack.c.0.s8 %v1036
        %v1038 = vperm.slane %v1032, %v1037
        %v1040 = vunpack.c.l.s4 1934713408
        %v1041 = vunpack.c.0.s8 %v1040
        %v1042 = vperm.slane %v1034, %v1041
        %v1043 = vrot.slane %v1030, 4
        %v1044 = vsel %vm1007, %v1043, %v1018
        %v1045 = vrot.slane %v1018, 4
        %v1046 = vsel %vm1007, %v1030, %v1045
        %v1048 = vunpack.c.l.s4 1934713408
        %v1049 = vunpack.c.0.s8 %v1048
        %v1050 = vperm.slane %v1044, %v1049
        %v1052 = vunpack.c.l.s4 1934713408
        %v1053 = vunpack.c.0.s8 %v1052
        %v1054 = vperm.slane %v1046, %v1053
        %v1055 = vrot.slane %v1038, 4
        %v1056 = vsel %vm1007, 0.0, %v1055
        %v1057 = vrot.slane %v1042, 4
        %v1058 = vsel %vm1007, 0.0, %v1057
        %v1059 = vrot.slane %v1050, 4
        %v1060 = vsel %vm1007, 0.0, %v1059
        %v1061 = vrot.slane %v1054, 4
        %v1062 = vsel %vm1007, 0.0, %v1061
        %v1063 = vsel %vm1007, %v1057, %v1038
        %v1065 = vunpack.c.l.s4 1983009808
        %v1066 = vunpack.c.0.s8 %v1065
        %v1067 = vperm.slane %v1063, %v1066
        %v1068 = vrot.slane %v1058, 4
        %v1069 = vsel %vm1007, %v1068, %v1056
        %v1071 = vunpack.c.l.s4 1983009808
        %v1072 = vunpack.c.0.s8 %v1071
        %v1073 = vperm.slane %v1069, %v1072
        %v1074 = vsel %vm1007, %v1061, %v1050
        %v1076 = vunpack.c.l.s4 1983009808
        %v1077 = vunpack.c.0.s8 %v1076
        %v1078 = vperm.slane %v1074, %v1077
        %v1079 = vrot.slane %v1062, 4
        %v1080 = vsel %vm1007, %v1079, %v1060
        %v1082 = vunpack.c.l.s4 1983009808
        %v1083 = vunpack.c.0.s8 %v1082
        %v1084 = vperm.slane %v1080, %v1083
        %v1085 = vrot.slane %v1073, 4
        %v1086 = vsel %vm1007, %v1085, %v1067
        %v1087 = vrot.slane %v1067, 4
        %v1088 = vsel %vm1007, %v1073, %v1087
        %v1090 = vunpack.c.l.s4 1934713408
        %v1091 = vunpack.c.0.s8 %v1090
        %v1092 = vperm.slane %v1086, %v1091
        %v1094 = vunpack.c.l.s4 1934713408
        %v1095 = vunpack.c.0.s8 %v1094
        %v1096 = vperm.slane %v1088, %v1095
        %v1097 = vrot.slane %v1084, 4
        %v1098 = vsel %vm1007, %v1097, %v1078
        %v1099 = vrot.slane %v1078, 4
        %v1100 = vsel %vm1007, %v1084, %v1099
        %v1102 = vunpack.c.l.s4 1934713408
        %v1103 = vunpack.c.0.s8 %v1102
        %v1104 = vperm.slane %v1098, %v1103
        %v1106 = vunpack.c.l.s4 1934713408
        %v1107 = vunpack.c.0.s8 %v1106
        %v1108 = vperm.slane %v1100, %v1107
        %v1109 = vrot.slane %v1104, 4
        %v1110 = vsel %vm1007, %v1109, %v1092
        %v1111 = vrot.slane %v1092, 4
        %v1112 = vsel %vm1007, %v1104, %v1111
        %v1113 = vrot.slane %v1108, 4
        %v1114 = vsel %vm1007, %v1113, %v1096
        %v1115 = vrot.slane %v1096, 4
        %v1116 = vsel %vm1007, %v1108, %v1115
        %v1117 = vpack.c.bf16 %v1110, %v1110
        %v1118 = vpack.c.bf16 %v1112, %v1112
        %v1119 = vpack.c.bf16 %v1114, %v1114
        %v1120 = vpack.c.bf16 %v1116, %v1116
        %v1121 = vld [vmem:[#allocation2] sm:$0xf]
        %v1122 = vld [vmem:[#allocation2 + $0x4] sm:$0xf]
        %v1123 = vld [vmem:[#allocation2 + $0x8] sm:$0xf]
        %v1124 = vld [vmem:[#allocation2 + $0xc] sm:$0xf]
        %vm1125 = vcmask 64512
        %v1127 = vsel %vm1125, %v1117, 0
        %v1130 = vsel %vm1125, %v1121, 0
        %1132 = vmatpush.bf16.xpose.msra.mxu0 0
        %1133 = vmatpush.bf16.xpose.msra.mxu0 0
        %1134 = vmatpush.bf16.xpose.msra.mxu0 0
        %1135 = vmatpush.bf16.xpose.msra.mxu0 0
        %1136 = vmatpush.bf16.xpose.msra.mxu0 0
        %1137 = vmatpush.bf16.xpose.msra.mxu0 0
        %1138 = vmatpush.bf16.xpose.msra.mxu0 0
        %1139 = vmatpush.bf16.xpose.msra.mxu0 %v1130
        %1140 = vmatmul.bf16.gmra.mxu0 %v1127
        %v1141 = vpop.f32.mrf.mxu0
        %v1142 = vadd.f32 0.0, %v1141
        %v1143 = vpop.f32.mrf.mxu0
        %1144 = vdwg.mxu0
        %v1146 = vsel %vm1125, %v1118, 0
        %v1149 = vsel %vm1125, %v1122, 0
        %1151 = vmatpush.bf16.xpose.msra.mxu0 0
        %1152 = vmatpush.bf16.xpose.msra.mxu0 0
        %1153 = vmatpush.bf16.xpose.msra.mxu0 0
        %1154 = vmatpush.bf16.xpose.msra.mxu0 0
        %1155 = vmatpush.bf16.xpose.msra.mxu0 0
        %1156 = vmatpush.bf16.xpose.msra.mxu0 0
        %1157 = vmatpush.bf16.xpose.msra.mxu0 0
        %1158 = vmatpush.bf16.xpose.msra.mxu0 %v1149
        %1159 = vmatmul.bf16.gmra.mxu0 %v1146
        %v1160 = vpop.f32.mrf.mxu0
        %v1161 = vadd.f32 0.0, %v1160
        %v1162 = vpop.f32.mrf.mxu0
        %1163 = vdwg.mxu0
        %v1165 = vsel %vm1125, %v1119, 0
        %v1168 = vsel %vm1125, %v1123, 0
        %1170 = vmatpush.bf16.xpose.msra.mxu0 0
        %1171 = vmatpush.bf16.xpose.msra.mxu0 0
        %1172 = vmatpush.bf16.xpose.msra.mxu0 0
        %1173 = vmatpush.bf16.xpose.msra.mxu0 0
        %1174 = vmatpush.bf16.xpose.msra.mxu0 0
        %1175 = vmatpush.bf16.xpose.msra.mxu0 0
        %1176 = vmatpush.bf16.xpose.msra.mxu0 0
        %1177 = vmatpush.bf16.xpose.msra.mxu0 %v1168
        %1178 = vmatmul.bf16.gmra.mxu0 %v1165
        %v1179 = vpop.f32.mrf.mxu0
        %v1180 = vadd.f32 0.0, %v1179
        %v1181 = vpop.f32.mrf.mxu0
        %1182 = vdwg.mxu0
        %v1184 = vsel %vm1125, %v1120, 0
        %v1187 = vsel %vm1125, %v1124, 0
        %1189 = vmatpush.bf16.xpose.msra.mxu0 0
        %1190 = vmatpush.bf16.xpose.msra.mxu0 0
        %1191 = vmatpush.bf16.xpose.msra.mxu0 0
        %1192 = vmatpush.bf16.xpose.msra.mxu0 0
        %1193 = vmatpush.bf16.xpose.msra.mxu0 0
        %1194 = vmatpush.bf16.xpose.msra.mxu0 0
        %1195 = vmatpush.bf16.xpose.msra.mxu0 0
        %1196 = vmatpush.bf16.xpose.msra.mxu0 %v1187
        %1197 = vmatmul.bf16.gmra.mxu0 %v1184
        %v1198 = vpop.f32.mrf.mxu0
        %v1199 = vadd.f32 0.0, %v1198
        %v1200 = vpop.f32.mrf.mxu0
        %1201 = vdwg.mxu0
        %v1202 = vld [vmem:[%s571] sm:$0xf]
        %v1203 = vunpack.c.l.bf16 %v1202
        %vm1204 = vcmp.gt.f32.partialorder %v1203, 0.0
        %v1205 = vsel %vm1204, 1, 0
        %vm1206 = vcmp.eq.s32.totalorder %v1205, 1
        %v1207 = vsel %vm1206, -10000.0, %v1142
        %v1208 = vsel %vm1206, -10000.0, %v1161
        %v1209 = vsel %vm1206, -10000.0, %v1180
        %v1210 = vsel %vm1206, -10000.0, %v1199
        %v1211 = vsel %vm1125, %v1207, -inf
        %1212 = vmax.xlane.f32.xlu0 %v1211
        %v1213 = vpop.xlane.xlu0 %1212
        %v1214 = vsel %vm1125, %v1208, -inf
        %1215 = vmax.xlane.f32.xlu0 %v1214
        %v1216 = vpop.xlane.xlu0 %1215
        %v1217 = vsel %vm1125, %v1209, -inf
        %1218 = vmax.xlane.f32.xlu0 %v1217
        %v1219 = vpop.xlane.xlu0 %1218
        %v1220 = vsel %vm1125, %v1210, -inf
        %1221 = vmax.xlane.f32.xlu0 %v1220
        %v1222 = vpop.xlane.xlu0 %1221
        %v1223 = vsub.f32 %v1207, %v1213
        %v1224 = vsub.f32 %v1208, %v1216
        %v1225 = vsub.f32 %v1209, %v1219
        %v1226 = vsub.f32 %v1210, %v1222
        %v1227 = vmul.f32 %v1223, 1.442695
        %v1228 = vpow.pop %v1227
        %v1229 = vmul.f32 %v1224, 1.442695
        %v1230 = vpow.pop %v1229
        %v1231 = vmul.f32 %v1225, 1.442695
        %v1232 = vpow.pop %v1231
        %v1233 = vmul.f32 %v1226, 1.442695
        %v1234 = vpow.pop %v1233
        %v1235 = vsel %vm1125, %v1228, 0.0
        %1236 = vadd.xlane.f32.xlu0 %v1235
        %v1237 = vpop.xlane.xlu0 %1236
        %v1238 = vsel %vm1125, %v1230, 0.0
        %1239 = vadd.xlane.f32.xlu0 %v1238
        %v1240 = vpop.xlane.xlu0 %1239
        %v1241 = vsel %vm1125, %v1232, 0.0
        %1242 = vadd.xlane.f32.xlu0 %v1241
        %v1243 = vpop.xlane.xlu0 %1242
        %v1244 = vsel %vm1125, %v1234, 0.0
        %1245 = vadd.xlane.f32.xlu0 %v1244
        %v1246 = vpop.xlane.xlu0 %1245
        %v1247 = vrcp.pop %v1237
        %v1248 = vrcp.pop %v1240
        %v1249 = vrcp.pop %v1243
        %v1250 = vrcp.pop %v1246
        %v1251 = vmul.f32 %v1228, %v1247
        %v1252 = vmul.f32 %v1230, %v1248
        %v1253 = vmul.f32 %v1232, %v1249
        %v1254 = vmul.f32 %v1234, %v1250
        %1255 = vst.msk [vmem:[%s641] sm:$0xff] %vm1125, %v1251
        %1256 = vst.msk [vmem:[%s641 + $0x8] sm:$0xff] %vm1125, %v1252
        %1257 = vst.msk [vmem:[%s641 + $0x10] sm:$0xff] %vm1125, %v1253
        %1258 = vst.msk [vmem:[%s641 + $0x18] sm:$0xff] %vm1125, %v1254
        %v1259 = vpack.c.bf16 %v1251, %v1251
        %v1260 = vpack.c.bf16 %v1252, %v1252
        %v1261 = vpack.c.bf16 %v1253, %v1253
        %v1262 = vpack.c.bf16 %v1254, %v1254
        %v1263 = vld [vmem:[#allocation3] sm:$0xf]
        %v1264 = vld [vmem:[#allocation3 + $0x4] sm:$0xf]
        %v1265 = vld [vmem:[#allocation3 + $0x8] sm:$0xf]
        %v1266 = vld [vmem:[#allocation3 + $0xc] sm:$0xf]
        %v1268 = vsel %vm1125, %v1259, 0
        %vm1270 = vcmask 1043456
        %v1272 = vsel %vm1270, %v1263, 0
        %1274 = vmatpush.bf16.msra.mxu0 0
        %1275 = vmatpush.bf16.msra.mxu0 0
        %1276 = vmatpush.bf16.msra.mxu0 0
        %1277 = vmatpush.bf16.msra.mxu0 0
        %1278 = vmatpush.bf16.msra.mxu0 0
        %1279 = vmatpush.bf16.msra.mxu0 0
        %1280 = vmatpush.bf16.msra.mxu0 0
        %1281 = vmatpush.bf16.msra.mxu0 %v1272
        %1282 = vmatmul.bf16.gmra.mxu0 %v1268
        %v1283 = vpop.f32.mrf.mxu0
        %v1284 = vadd.f32 0.0, %v1283
        %v1285 = vpop.f32.mrf.mxu0
        %1286 = vdwg.mxu0
        %v1288 = vsel %vm1125, %v1260, 0
        %v1291 = vsel %vm1270, %v1264, 0
        %1293 = vmatpush.bf16.msra.mxu0 0
        %1294 = vmatpush.bf16.msra.mxu0 0
        %1295 = vmatpush.bf16.msra.mxu0 0
        %1296 = vmatpush.bf16.msra.mxu0 0
        %1297 = vmatpush.bf16.msra.mxu0 0
        %1298 = vmatpush.bf16.msra.mxu0 0
        %1299 = vmatpush.bf16.msra.mxu0 0
        %1300 = vmatpush.bf16.msra.mxu0 %v1291
        %1301 = vmatmul.bf16.gmra.mxu0 %v1288
        %v1302 = vpop.f32.mrf.mxu0
        %v1303 = vadd.f32 0.0, %v1302
        %v1304 = vpop.f32.mrf.mxu0
        %1305 = vdwg.mxu0
        %v1307 = vsel %vm1125, %v1261, 0
        %v1310 = vsel %vm1270, %v1265, 0
        %1312 = vmatpush.bf16.msra.mxu0 0
        %1313 = vmatpush.bf16.msra.mxu0 0
        %1314 = vmatpush.bf16.msra.mxu0 0
        %1315 = vmatpush.bf16.msra.mxu0 0
        %1316 = vmatpush.bf16.msra.mxu0 0
        %1317 = vmatpush.bf16.msra.mxu0 0
        %1318 = vmatpush.bf16.msra.mxu0 0
        %1319 = vmatpush.bf16.msra.mxu0 %v1310
        %1320 = vmatmul.bf16.gmra.mxu0 %v1307
        %v1321 = vpop.f32.mrf.mxu0
        %v1322 = vadd.f32 0.0, %v1321
        %v1323 = vpop.f32.mrf.mxu0
        %1324 = vdwg.mxu0
        %v1326 = vsel %vm1125, %v1262, 0
        %v1329 = vsel %vm1270, %v1266, 0
        %1331 = vmatpush.bf16.msra.mxu0 0
        %1332 = vmatpush.bf16.msra.mxu0 0
        %1333 = vmatpush.bf16.msra.mxu0 0
        %1334 = vmatpush.bf16.msra.mxu0 0
        %1335 = vmatpush.bf16.msra.mxu0 0
        %1336 = vmatpush.bf16.msra.mxu0 0
        %1337 = vmatpush.bf16.msra.mxu0 0
        %1338 = vmatpush.bf16.msra.mxu0 %v1329
        %1339 = vmatmul.bf16.gmra.mxu0 %v1326
        %v1340 = vpop.f32.mrf.mxu0
        %v1341 = vadd.f32 0.0, %v1340
        %v1342 = vpop.f32.mrf.mxu0
        %1343 = vdwg.mxu0
        %v1344 = vrot.slane %v1322, 4
        %v1345 = vsel %vm1007, %v1344, %v1284
        %v1346 = vrot.slane %v1284, 4
        %v1347 = vsel %vm1007, %v1322, %v1346
        %v1349 = vunpack.c.l.s4 1983009808
        %v1350 = vunpack.c.0.s8 %v1349
        %v1351 = vperm.slane %v1345, %v1350
        %v1353 = vunpack.c.l.s4 1983009808
        %v1354 = vunpack.c.0.s8 %v1353
        %v1355 = vperm.slane %v1347, %v1354
        %v1356 = vrot.slane %v1341, 4
        %v1357 = vsel %vm1007, %v1356, %v1303
        %v1358 = vrot.slane %v1303, 4
        %v1359 = vsel %vm1007, %v1341, %v1358
        %v1361 = vunpack.c.l.s4 1983009808
        %v1362 = vunpack.c.0.s8 %v1361
        %v1363 = vperm.slane %v1357, %v1362
        %v1365 = vunpack.c.l.s4 1983009808
        %v1366 = vunpack.c.0.s8 %v1365
        %v1367 = vperm.slane %v1359, %v1366
        %v1368 = vrot.slane %v1363, 4
        %v1369 = vsel %vm1007, %v1368, %v1351
        %v1370 = vrot.slane %v1351, 4
        %v1371 = vsel %vm1007, %v1363, %v1370
        %v1373 = vunpack.c.l.s4 1934713408
        %v1374 = vunpack.c.0.s8 %v1373
        %v1375 = vperm.slane %v1369, %v1374
        %v1377 = vunpack.c.l.s4 1934713408
        %v1378 = vunpack.c.0.s8 %v1377
        %v1379 = vperm.slane %v1371, %v1378
        %v1380 = vrot.slane %v1367, 4
        %v1381 = vsel %vm1007, %v1380, %v1355
        %v1382 = vrot.slane %v1355, 4
        %v1383 = vsel %vm1007, %v1367, %v1382
        %v1385 = vunpack.c.l.s4 1934713408
        %v1386 = vunpack.c.0.s8 %v1385
        %v1387 = vperm.slane %v1381, %v1386
        %v1389 = vunpack.c.l.s4 1934713408
        %v1390 = vunpack.c.0.s8 %v1389
        %v1391 = vperm.slane %v1383, %v1390
        %v1392 = vrot.slane %v1375, 4
        %v1393 = vsel %vm1007, 0.0, %v1392
        %v1394 = vrot.slane %v1379, 4
        %v1395 = vsel %vm1007, 0.0, %v1394
        %v1396 = vrot.slane %v1387, 4
        %v1397 = vsel %vm1007, 0.0, %v1396
        %v1398 = vrot.slane %v1391, 4
        %v1399 = vsel %vm1007, 0.0, %v1398
        %v1400 = vsel %vm1007, %v1394, %v1375
        %v1402 = vunpack.c.l.s4 1983009808
        %v1403 = vunpack.c.0.s8 %v1402
        %v1404 = vperm.slane %v1400, %v1403
        %v1405 = vrot.slane %v1395, 4
        %v1406 = vsel %vm1007, %v1405, %v1393
        %v1408 = vunpack.c.l.s4 1983009808
        %v1409 = vunpack.c.0.s8 %v1408
        %v1410 = vperm.slane %v1406, %v1409
        %v1411 = vsel %vm1007, %v1398, %v1387
        %v1413 = vunpack.c.l.s4 1983009808
        %v1414 = vunpack.c.0.s8 %v1413
        %v1415 = vperm.slane %v1411, %v1414
        %v1416 = vrot.slane %v1399, 4
        %v1417 = vsel %vm1007, %v1416, %v1397
        %v1419 = vunpack.c.l.s4 1983009808
        %v1420 = vunpack.c.0.s8 %v1419
        %v1421 = vperm.slane %v1417, %v1420
        %v1422 = vrot.slane %v1410, 4
        %v1423 = vsel %vm1007, %v1422, %v1404
        %v1424 = vrot.slane %v1404, 4
        %v1425 = vsel %vm1007, %v1410, %v1424
        %v1427 = vunpack.c.l.s4 1934713408
        %v1428 = vunpack.c.0.s8 %v1427
        %v1429 = vperm.slane %v1423, %v1428
        %v1431 = vunpack.c.l.s4 1934713408
        %v1432 = vunpack.c.0.s8 %v1431
        %v1433 = vperm.slane %v1425, %v1432
        %v1434 = vrot.slane %v1421, 4
        %v1435 = vsel %vm1007, %v1434, %v1415
        %v1436 = vrot.slane %v1415, 4
        %v1437 = vsel %vm1007, %v1421, %v1436
        %v1439 = vunpack.c.l.s4 1934713408
        %v1440 = vunpack.c.0.s8 %v1439
        %v1441 = vperm.slane %v1435, %v1440
        %v1443 = vunpack.c.l.s4 1934713408
        %v1444 = vunpack.c.0.s8 %v1443
        %v1445 = vperm.slane %v1437, %v1444
        %v1446 = vrot.slane %v1441, 4
        %v1447 = vsel %vm1007, %v1446, %v1429
        %v1448 = vrot.slane %v1429, 4
        %v1449 = vsel %vm1007, %v1441, %v1448
        %v1450 = vrot.slane %v1445, 4
        %v1451 = vsel %vm1007, %v1450, %v1433
        %v1452 = vrot.slane %v1433, 4
        %v1453 = vsel %vm1007, %v1445, %v1452
        %1455 = vrot.lane.b32.xlu0 %v1449, 8
        %v1456 = vpop.permute.xlu0 %1455
        %1459 = vrot.lane.b32.xlu0 %v1451, 16
        %v1460 = vpop.permute.xlu0 %1459
        %1463 = vrot.lane.b32.xlu0 %v1453, 24
        %v1464 = vpop.permute.xlu0 %1463
        %v1466 = vsel %vm1125, %v1447, %v1456
        %vm1467 = vcmask 130048
        %v1468 = vsel %vm1467, %v1466, %v1460
        %vm1469 = vcmask 195584
        %v1470 = vsel %vm1469, %v1468, %v1464
        %v1471 = vpack.c.bf16 %v1470, %v1470
        %v1472 = vld [vmem:[#allocation7] sm:$0xf]
        %v1473 = vld [vmem:[#allocation7 + $0x4] sm:$0xf]
        %v1474 = vld [vmem:[#allocation7 + $0x8] sm:$0xf]
        %v1475 = vld [vmem:[#allocation7 + $0xc] sm:$0xf]
        %v1476 = vld [vmem:[%s11] sm:$0x1]
        %v1478 = vperm.slane %v1476, 0
        %v1484 = vunpack.c.l.b16 %v1472
        %v1485 = vunpack.c.l.b16 %v1473
        %v1486 = vunpack.c.l.b16 %v1474
        %v1487 = vunpack.c.l.b16 %v1475
        %v1488 = vpack.c.b16 %v1485, %v1484
        %v1489 = vpack.c.b16 %v1487, %v1486
        %v1493 = vsel %vm978, %v1471, 0
        %1495 = vmatpush.bf16.msra.mxu0 0
        %1496 = vmatpush.bf16.msra.mxu0 0
        %1497 = vmatpush.bf16.msra.mxu0 0
        %1498 = vmatpush.bf16.msra.mxu0 0
        %1499 = vmatpush.bf16.msra.mxu0 0
        %1500 = vmatpush.bf16.msra.mxu0 0
        %1501 = vmatpush.bf16.msra.mxu0 %v1489
        %1502 = vmatpush.bf16.msra.mxu0 %v1488
        %1503 = vmatmul.bf16.gmra.mxu0 %v1493
        %v1504 = vpop.f32.mrf.mxu0
        %v1505 = vadd.f32 %v1478, %v1504
        %v1506 = vpop.f32.mrf.mxu0
        %1507 = vdwg.mxu0
        %v1508 = vadd.f32 %v956, %v1505
        %v1509 = vsel %vm978, %v1508, 0.0
        %1510 = vadd.xlane.f32.xlu0 %v1509
        %v1511 = vpop.xlane.xlu0 %1510
        %v1512 = vrcp.pop 32.0
        %v1513 = vmul.f32 32.0, %v1512
        %v1514 = vsub.f32 1.0, %v1513
        %v1515 = vmul.f32 %v1512, %v1514
        %v1516 = vadd.f32 %v1512, %v1515
        %vm1517 = vweird.f32 %v1512
        %v1518 = vsel %vm1517, %v1512, %v1516
        %v1519 = vmul.f32 %v1511, %v1518
        %v1520 = vsub.f32 %v1508, %v1519
        %v1521 = vmul.f32 %v1520, %v1520
        %v1522 = vsel %vm978, %v1521, 0.0
        %1523 = vadd.xlane.f32.xlu0 %v1522
        %v1524 = vpop.xlane.xlu0 %1523
        %v1525 = vmul.f32 %v1524, %v1518
        %v1526 = vadd.f32 %v1525, 1e-05
        %v1527 = vrsqrt.pop %v1526
        %v1528 = vmul.f32 %v1527, %v1526
        %v1529 = vmul.f32 %v1528, %v1527
        %v1530 = vmul.f32 0.5, %v1529
        %v1531 = vsub.f32 1.5, %v1530
        %v1532 = vmul.f32 %v1527, %v1531
        %vm1533 = vweird.f32 %v1526
        %vm1534 = vweird.f32 %v1527
        %vm1535 = vmor %vm1533, %vm1534
        %v1536 = vsel %vm1535, %v1527, %v1532
        %v1537 = vmul.f32 %v1520, %v1536
        %v1539 = vperm.slane %v647, 0
        %v1541 = vmul.f32 %v1537, %v1539
        %v1543 = vperm.slane %v648, 0
        %v1545 = vadd.f32 %v1541, %v1543
        %v1546 = vpack.c.bf16 %v1545, %v1545
        %v1547 = vld [vmem:[#allocation9] sm:$0xf]
        %v1548 = vld [vmem:[#allocation9 + $0x4] sm:$0xf]
        %v1549 = vld [vmem:[#allocation9 + $0x8] sm:$0xf]
        %v1550 = vld [vmem:[#allocation9 + $0xc] sm:$0xf]
        %v1551 = vld [vmem:[%s13] sm:$0x1]
        %v1553 = vperm.slane %v1551, 0
        %v1559 = vunpack.c.l.b16 %v1547
        %v1560 = vunpack.c.l.b16 %v1548
        %v1561 = vunpack.c.l.b16 %v1549
        %v1562 = vunpack.c.l.b16 %v1550
        %v1563 = vpack.c.b16 %v1560, %v1559
        %v1564 = vpack.c.b16 %v1562, %v1561
        %v1568 = vsel %vm978, %v1546, 0
        %1570 = vmatpush.bf16.msra.mxu0 0
        %1571 = vmatpush.bf16.msra.mxu0 0
        %1572 = vmatpush.bf16.msra.mxu0 0
        %1573 = vmatpush.bf16.msra.mxu0 0
        %1574 = vmatpush.bf16.msra.mxu0 0
        %1575 = vmatpush.bf16.msra.mxu0 0
        %1576 = vmatpush.bf16.msra.mxu0 %v1564
        %1577 = vmatpush.bf16.msra.mxu0 %v1563
        %1578 = vmatmul.bf16.gmra.mxu0 %v1568
        %v1579 = vpop.f32.mrf.mxu0
        %v1580 = vadd.f32 %v1553, %v1579
        %v1581 = vpop.f32.mrf.mxu0
        %1582 = vdwg.mxu0
        %v1583 = vmax.f32 %v1580, 0.0
        %v1584 = vpack.c.bf16 %v1583, %v1583
        %v1585 = vld [vmem:[%s14] sm:$0xf]
        %v1586 = vld [vmem:[%s14 + $0x4] sm:$0xf]
        %v1587 = vld [vmem:[%s14 + $0x8] sm:$0xf]
        %v1588 = vld [vmem:[%s14 + $0xc] sm:$0xf]
        %v1589 = vld [vmem:[%s14 + $0x10] sm:$0xf]
        %v1590 = vld [vmem:[%s14 + $0x14] sm:$0xf]
        %v1591 = vld [vmem:[%s14 + $0x18] sm:$0xf]
        %v1592 = vld [vmem:[%s14 + $0x1c] sm:$0xf]
        %v1593 = vld [vmem:[%s15] sm:$0x1]
        %v1595 = vperm.slane %v1593, 0
        %v1605 = vunpack.c.l.b16 %v1585
        %v1606 = vunpack.c.l.b16 %v1586
        %v1607 = vunpack.c.l.b16 %v1587
        %v1608 = vunpack.c.l.b16 %v1588
        %v1609 = vunpack.c.l.b16 %v1589
        %v1610 = vunpack.c.l.b16 %v1590
        %v1611 = vunpack.c.l.b16 %v1591
        %v1612 = vunpack.c.l.b16 %v1592
        %v1613 = vpack.c.b16 %v1606, %v1605
        %v1614 = vpack.c.b16 %v1608, %v1607
        %v1615 = vpack.c.b16 %v1610, %v1609
        %v1616 = vpack.c.b16 %v1612, %v1611
        %vm1621 = vcmask 523264
        %v1623 = vsel %vm1621, %v1584, 0
        %1625 = vmatpush.bf16.msra.mxu0 0
        %1626 = vmatpush.bf16.msra.mxu0 0
        %1627 = vmatpush.bf16.msra.mxu0 0
        %1628 = vmatpush.bf16.msra.mxu0 0
        %1629 = vmatpush.bf16.msra.mxu0 %v1616
        %1630 = vmatpush.bf16.msra.mxu0 %v1615
        %1631 = vmatpush.bf16.msra.mxu0 %v1614
        %1632 = vmatpush.bf16.msra.mxu0 %v1613
        %1633 = vmatmul.bf16.gmra.mxu0 %v1623
        %v1634 = vpop.f32.mrf.mxu0
        %v1635 = vadd.f32 %v1595, %v1634
        %v1636 = vpop.f32.mrf.mxu0
        %1637 = vdwg.mxu0
        %v1638 = vadd.f32 %v1545, %v1635
        %v1639 = vsel %vm978, %v1638, 0.0
        %1640 = vadd.xlane.f32.xlu0 %v1639
        %v1641 = vpop.xlane.xlu0 %1640
        %v1642 = vmul.f32 %v1641, %v1518
        %v1643 = vsub.f32 %v1638, %v1642
        %v1644 = vmul.f32 %v1643, %v1643
        %v1645 = vsel %vm978, %v1644, 0.0
        %1646 = vadd.xlane.f32.xlu0 %v1645
        %v1647 = vpop.xlane.xlu0 %1646
        %v1648 = vmul.f32 %v1647, %v1518
        %v1649 = vadd.f32 %v1648, 1e-05
        %v1650 = vrsqrt.pop %v1649
        %v1651 = vmul.f32 %v1650, %v1649
        %v1652 = vmul.f32 %v1651, %v1650
        %v1653 = vmul.f32 0.5, %v1652
        %v1654 = vsub.f32 1.5, %v1653
        %v1655 = vmul.f32 %v1650, %v1654
        %vm1656 = vweird.f32 %v1649
        %vm1657 = vweird.f32 %v1650
        %vm1658 = vmor %vm1656, %vm1657
        %v1659 = vsel %vm1658, %v1650, %v1655
        %v1660 = vmul.f32 %v1643, %v1659
        %v1662 = vperm.slane %v649, 0
        %v1664 = vmul.f32 %v1660, %v1662
        %v1666 = vperm.slane %v650, 0
        %v1668 = vadd.f32 %v1664, %v1666
        %1669 = vst.msk [vmem:[%s634] sm:$0xff] %vm978, %v1668
        %s1670 = sand.u32 %s409, 1
        %s1671 = scalar_lea.sflag [#allocation6], %s1670
        %s1672 = sand.u32 %s409, 1
        %s1673 = smul.addr %s1672, 8
        %s1674 = scalar_lea.vmem [#allocation10], %s1673
        %s1675 = sand.u32 %s437, 1
        %s1676 = scalar_lea.sflag [#allocation12], %s1675
        %s1677 = sand.u32 %s437, 1
        %s1678 = smul.addr %s1677, 32
        %s1679 = scalar_lea.vmem [#allocation11], %s1678
        // Predicated region
        $region101: #{tpu_custom_call.1} parent=83 // pred_check
          %p1680 = pneg %p419
        $region102: #{tpu_custom_call.1} parent=83 // pred_check_branch
          %1682 = sbr.rel (%p1680) target = $region104
        $region103: #{tpu_custom_call.1} parent=83 // pred_region
          %1684 = vsyncadd %s1671, 0
          %s1685 = sadd.s32 %s44, %s43
          %s1686 = smul.addr %s1685, 8
          %s1687 = scalar_lea.hbm %s16, %s1686
          %s1689 = sshll.u32 %s1674, 4
          %s1690 = int_to_ptr.vmem [resolvable:$true] %s1689
          %s1691 = sshll.u32 %s1687, 4
          %s1692 = int_to_ptr.hbm [resolvable:$true] %s1691
          %1694 = dma.vmem_to_hbm [thread:$0]  %s1690, 128, %s1692, %s1671
        $region104: #{tpu_custom_call.1} parent=83 // pred_fallthru
          _
        // Predicated region
        $region105: #{tpu_custom_call.1} parent=83 // pred_check
          %p1695 = pneg %p447
        $region106: #{tpu_custom_call.1} parent=83 // pred_check_branch
          %1697 = sbr.rel (%p1695) target = $region108
        $region107: #{tpu_custom_call.1} parent=83 // pred_region
          %1699 = vsyncadd %s1676, 0
          %s1700 = smul.addr %s43, 4
          %s1701 = sadd.s32 %s44, %s1700
          %s1702 = smul.addr %s1701, 8
          %s1703 = scalar_lea.hbm %s17, %s1702
          %s1704 = sshll.u32 %s1679, 4
          %s1705 = int_to_ptr.vmem [resolvable:$true] %s1704
          %s1706 = sshll.u32 %s1703, 4
          %s1707 = int_to_ptr.hbm [resolvable:$true] %s1706
          %1712 = dma.vmem_to_hbm [thread:$0]  %s1705, 512, %s1707, %s1676, 128, 128, 8
        $region108: #{tpu_custom_call.1} parent=83 // pred_fallthru
          _
      $region84: #{tpu_custom_call.1} parent=5 // pred_fallthru
        _
      %p1713 = scmp.le.s32.totalorder 2, %s34
      // Predicated region
      $region109: #{tpu_custom_call.1} parent=5 // pred_check
        %p1714 = pneg %p1713
      $region110: #{tpu_custom_call.1} parent=5 // pred_check_branch
        %1716 = sbr.rel (%p1714) target = $region112
      $region111: #{tpu_custom_call.1} parent=5 // pred_region
        %s1717 = ssub.s32 %s34, 2
        // Predicated region
        $region113: #{tpu_custom_call.1} parent=111 // pred_check
          %p1718 = pneg %p425
        $region114: #{tpu_custom_call.1} parent=111 // pred_check_branch
          %1720 = sbr.rel (%p1718) target = $region116
        $region115: #{tpu_custom_call.1} parent=111 // pred_region
          %s1721 = sand.u32 %s410, 1
          %s1722 = scalar_lea.sflag [#allocation6], %s1721
          %s1723 = sand.u32 %s410, 1
          %s1724 = smul.addr %s1723, 8
          %s1725 = scalar_lea.vmem [#allocation10], %s1724
          %1727 = dma.done %s1722, 128
        $region116: #{tpu_custom_call.1} parent=111 // pred_fallthru
          _
        // Predicated region
        $region117: #{tpu_custom_call.1} parent=111 // pred_check
          %p1728 = pneg %p453
        $region118: #{tpu_custom_call.1} parent=111 // pred_check_branch
          %1730 = sbr.rel (%p1728) target = $region120
        $region119: #{tpu_custom_call.1} parent=111 // pred_region
          %s1731 = sand.u32 %s438, 1
          %s1732 = scalar_lea.sflag [#allocation12], %s1731
          %s1733 = sand.u32 %s438, 1
          %s1734 = smul.addr %s1733, 32
          %s1735 = scalar_lea.vmem [#allocation11], %s1734
          %1737 = dma.done %s1732, 512
        $region120: #{tpu_custom_call.1} parent=111 // pred_fallthru
          _
      $region112: #{tpu_custom_call.1} parent=5 // pred_fallthru
        _
    $region6: #{tpu_custom_call.1} parent=1 // loop_footer
      %s38 = sadd.s32 1, %s34
    $region7: #{tpu_custom_call.1} parent=1 // loop_footer_branch
      %33 = sbr.rel target = $region3
    $region8: #{tpu_custom_call.1} parent=1 // loop_exit
      _
    %1738 = vsyncpa [#allocation5], 1
    %s1739 = scalar_lea.sflag [#allocation5], 1
    %1740 = vsyncpa %s1739, 1
    %1741 = vsyncpa [#allocation8], 1
    %1742 = vsyncpa [#allocation6], 1
    %s1743 = scalar_lea.sflag [#allocation6], 1
    %1744 = vsyncpa %s1743, 1
    %1745 = vsyncpa [#allocation12], 1
    %s1746 = scalar_lea.sflag [#allocation12], 1
    %1747 = vsyncpa %s1746, 1

</llo_original>
